<compile_context>
chip_gen: v7x
topology: tpu7x:2x2x1
jax: 0.10.0
libtpu: 0.0.40
codegen_flags: <defaults>
</compile_context>

<pallas_src>
import functools

import jax
import jax.numpy as jnp
from jax.experimental import pallas as pl
from jax.experimental.pallas import tpu as pltpu

LANE = 128


def _round_up(n, m):
    return ((n + m - 1) // m) * m


def pad2(a, rows, cols, dtype=jnp.float32):
    out = jnp.zeros((rows, cols), dtype)
    return out.at[: a.shape[0], : a.shape[1]].set(a.astype(dtype))


def pad_row(v, cols):
    out = jnp.zeros((1, cols), jnp.float32)
    return out.at[0, : v.shape[0]].set(v.astype(jnp.float32))


# --------------------------------------------------------------------------------------
# Shared math (used by the Pallas kernel body AND by the XLA-matched reference)
# --------------------------------------------------------------------------------------

def _fused_protonet_math(n_sup,
                         a, x,
                         w0, s0, t0, w1, s1, t1, w2, s2, t2,
                         wres, bres, wl1, bl1, wl2, bl2, onehot_t):
    """a: (NT,NT) bf16 block-diag adjacency (support | query); x: (NT,CIN_PAD) bf16;
    onehot_t: (C_PAD,NT) bf16 row-normalized one-hot (query / padded cols are 0).
    Returns (-cdist) of shape (NT - n_sup, C_PAD) in f32."""

    def gcn_layer(h_b, w, s, t):
        z = jnp.dot(h_b, w, preferred_element_type=jnp.float32)                  # MXU bf16 in / f32 acc
        z = jnp.dot(a, z.astype(jnp.bfloat16), preferred_element_type=jnp.float32)
        return jnp.maximum(z * s + t, 0.0)                                        # BN(eval)+bias fold, ReLU

    # layer 0 + residual projection
    h = gcn_layer(x, w0, s0, t0)
    h = h + jnp.dot(x, wres, preferred_element_type=jnp.float32) + bres
    # layers 1, 2
    h = gcn_layer(h.astype(jnp.bfloat16), w1, s1, t1)
    h = gcn_layer(h.astype(jnp.bfloat16), w2, s2, t2)

    # MLP head: Linear -> ReLU -> (Dropout=id) -> Linear
    hb = h.astype(jnp.bfloat16)
    z = jnp.maximum(jnp.dot(hb, wl1, preferred_element_type=jnp.float32) + bl1, 0.0)
    feat = jnp.dot(z.astype(jnp.bfloat16), wl2, preferred_element_type=jnp.float32) + bl2
    # feat: (NT, O_PAD) f32; rows [:n_sup] support / [n_sup:] query; padded cols are exactly 0

    feat_b = feat.astype(jnp.bfloat16)
    # prototypes = per-class mean of support features: row-normalized one-hot matmul on the MXU
    protos = jnp.dot(onehot_t, feat_b, preferred_element_type=jnp.float32)        # (C_PAD, O_PAD)
    protos_b = protos.astype(jnp.bfloat16)

    q = feat[n_sup:, :]                                                           # (Nq, O_PAD) f32
    qb = feat_b[n_sup:, :]

    # -cdist via the MXU identity: d2 = |q|^2 + |p|^2 - 2 q @ p^T  (no (Nq,C,F) intermediate)
    cross = jax.lax.dot_general(qb, protos_b, (((1,), (1,)), ((), ())),
                                preferred_element_type=jnp.float32)               # (Nq, C_PAD)
    q2 = jnp.sum(q * q, axis=-1, keepdims=True)                                   # (Nq, 1) lane reduce
    ones_row = jnp.full((1, protos.shape[1]), 1.0, dtype=jnp.bfloat16)
    p2 = jax.lax.dot_general(ones_row, (protos * protos).astype(jnp.bfloat16),
                             (((1,), (1,)), ((), ())),
                             preferred_element_type=jnp.float32)                  # (1, C_PAD) lane-dense row
    d2 = jnp.maximum(q2 + p2 - 2.0 * cross, 0.0)
    return -jnp.sqrt(d2)


def protonet_fused_kernel(n_sup, a_ref, x_ref,
                          w0_ref, s0_ref, t0_ref,
                          w1_ref, s1_ref, t1_ref,
                          w2_ref, s2_ref, t2_ref,
                          wres_ref, bres_ref,
                          wl1_ref, bl1_ref, wl2_ref, bl2_ref,
                          onehot_ref, out_ref):
    out_ref[...] = _fused_protonet_math(
        n_sup, a_ref[...], x_ref[...],
        w0_ref[...], s0_ref[...], t0_ref[...],
        w1_ref[...], s1_ref[...], t1_ref[...],
        w2_ref[...], s2_ref[...], t2_ref[...],
        wres_ref[...], bres_ref[...],
        wl1_ref[...], bl1_ref[...], wl2_ref[...], bl2_ref[...],
        onehot_ref[...])


# --------------------------------------------------------------------------------------
# Host-side preparation
# --------------------------------------------------------------------------------------

def build_normalized_adjacency(edge_index, num_nodes):
    """Dense D^-1/2 (A + I) D^-1/2 with A[dst, src] = 1 (source_to_target flow)."""
    # TODO(synk): duplicate edges / pre-existing self loops are deduplicated here, unlike PyG GCNConv.
    src, dst = edge_index[0], edge_index[1]
    A = jnp.zeros((num_nodes, num_nodes), jnp.float32).at[dst, src].set(1.0)
    A = jnp.maximum(A, jnp.eye(num_nodes, dtype=jnp.float32))
    deg = A.sum(axis=1)
    dinv = jnp.where(deg > 0, 1.0 / jnp.sqrt(deg), 0.0)
    return dinv[:, None] * A * dinv[None, :]


def prepare_encoder_params(p, eps=1e-5):
    """Zero-pad channel axes to 128 lanes, cast weights to bf16, fold BN(eval) + GCN bias."""
    cin, hid = p["w_layers"][0].shape
    out_ch = p["wl2"].shape[1]
    cin_p, h_p, o_p = _round_up(cin, LANE), _round_up(hid, LANE), _round_up(out_ch, LANE)

    enc = {"cin_p": cin_p, "h_p": h_p, "o_p": o_p}
    dims_in = [cin_p, h_p, h_p]
    for i in range(3):
        s = p["bn_gamma"][i] / jnp.sqrt(p["bn_var"][i] + eps)
        t = p["bn_beta"][i] - p["bn_mean"][i] * s + p["b_layers"][i] * s     # GCN bias folded in
        enc[f"w{i}"] = pad2(p["w_layers"][i], dims_in[i], h_p, jnp.bfloat16)
        enc[f"s{i}"] = pad_row(s, h_p)
        enc[f"t{i}"] = pad_row(t, h_p)
    enc["wres"] = pad2(p["w_res"], cin_p, h_p, jnp.bfloat16)
    enc["bres"] = pad_row(p["b_res"], h_p)
    enc["wl1"] = pad2(p["wl1"], h_p, h_p, jnp.bfloat16)
    enc["bl1"] = pad_row(p["bl1"], h_p)
    enc["wl2"] = pad2(p["wl2"], h_p, o_p, jnp.bfloat16)
    enc["bl2"] = pad_row(p["bl2"], o_p)
    return enc


def _prepare_fused_inputs(support_x, support_y, query_x, sup_ei, qry_ei, params, n_classes):
    n_sup, cin = support_x.shape
    n_qry = query_x.shape[0]
    nt = n_sup + n_qry

    enc = prepare_encoder_params(params)
    cin_p = enc["cin_p"]

    # block-diagonal normalized adjacency: one MXU pass handles both graphs independently
    a_sup = build_normalized_adjacency(sup_ei, n_sup)
    a_qry = build_normalized_adjacency(qry_ei, n_qry)
    a = (jnp.zeros((nt, nt), jnp.float32)
         .at[:n_sup, :n_sup].set(a_sup)
         .at[n_sup:, n_sup:].set(a_qry)).astype(jnp.bfloat16)

    x = (jnp.zeros((nt, cin_p), jnp.float32)
         .at[:n_sup, :cin].set(support_x)
         .at[n_sup:, :cin].set(query_x)).astype(jnp.bfloat16)

    # classes from unique(support_y) (sorted, like torch.unique); n_classes is static for jit
    classes = jnp.unique(support_y, size=n_classes)
    onehot = (classes[:, None] == support_y[None, :]).astype(jnp.float32)    # (C, n_sup)
    counts = onehot.sum(axis=1, keepdims=True)
    onehot_norm = onehot / jnp.maximum(counts, 1.0)                           # row-normalize -> dot gives mean
    c_pad = _round_up(n_classes, LANE)
    onehot_t = (jnp.zeros((c_pad, nt), jnp.float32)
                .at[:n_classes, :n_sup].set(onehot_norm)).astype(jnp.bfloat16)

    return a, x, enc, onehot_t, n_sup, n_qry, c_pad


@functools.partial(jax.jit, static_argnames=("n_classes",))
def protonet_forward(support_x, support_y, query_x, support_edge_index, query_edge_index,
                     params, n_classes):
    a, x, enc, onehot_t, n_sup, n_qry, c_pad = _prepare_fused_inputs(
        support_x, support_y, query_x, support_edge_index, query_edge_index, params, n_classes)

    weight_like = [enc["w0"], enc["s0"], enc["t0"],
                   enc["w1"], enc["s1"], enc["t1"],
                   enc["w2"], enc["s2"], enc["t2"],
                   enc["wres"], enc["bres"],
                   enc["wl1"], enc["bl1"], enc["wl2"], enc["bl2"]]
    operands = [a, x] + weight_like + [onehot_t]

    # explicit VMEM budget (everything is tiny here; keep well below every generation's limit)
    total_bytes = sum(int(op.size) * jnp.dtype(op.dtype).itemsize for op in operands)
    total_bytes += n_qry * c_pad * 4
    vmem_limit = int(min(max(4 * total_bytes + (1 << 20), 4 << 20), 32 << 20))

    vmem_spec = pl.BlockSpec(memory_space=pltpu.MemorySpace.VMEM)
    neg_dist = pl.pallas_call(
        functools.partial(protonet_fused_kernel, n_sup),
        out_shape=jax.ShapeDtypeStruct((n_qry, c_pad), jnp.float32),
        in_specs=[vmem_spec] * len(operands),
        out_specs=vmem_spec,
        compiler_params=pltpu.CompilerParams(vmem_limit_bytes=vmem_limit),
    )(*operands)
    return neg_dist[:, :n_classes]


# --------------------------------------------------------------------------------------
# References
# --------------------------------------------------------------------------------------

def protonet_reference_matched(support_x, support_y, query_x, sup_ei, qry_ei, params, n_classes):
    """Exactly the kernel's math (same bf16 casts / f32 accumulation), lowered by XLA instead of Mosaic."""
    a, x, enc, onehot_t, n_sup, _n_qry, _c_pad = _prepare_fused_inputs(
        support_x, support_y, query_x, sup_ei, qry_ei, params, n_classes)
    neg = _fused_protonet_math(
        n_sup, a, x,
        enc["w0"], enc["s0"], enc["t0"], enc["w1"], enc["s1"], enc["t1"],
        enc["w2"], enc["s2"], enc["t2"], enc["wres"], enc["bres"],
        enc["wl1"], enc["bl1"], enc["wl2"], enc["bl2"], onehot_t)
    return neg[:, :n_classes]


def encoder_reference_f32(x, edge_index, params, eps=1e-5):
    """Eval-mode PyTorch semantics, pure f32."""
    N = x.shape[0]
    a = build_normalized_adjacency(edge_index, N)
    h = x
    for i in range(3):
        s = params["bn_gamma"][i] / jnp.sqrt(params["bn_var"][i] + eps)
        t = params["bn_beta"][i] - params["bn_mean"][i] * s
        z = a @ (h @ params["w_layers"][i]) + params["b_layers"][i]
        z = jnp.maximum(z * s + t, 0.0)
        if i == 0:
            z = z + (x @ params["w_res"] + params["b_res"])
        h = z
    zz = jnp.maximum(h @ params["wl1"] + params["bl1"], 0.0)
    return zz @ params["wl2"] + params["bl2"]


def protonet_reference_f32(support_x, support_y, query_x, sup_ei, qry_ei, params):
    sup_feat = encoder_reference_f32(support_x, sup_ei, params)
    qry_feat = encoder_reference_f32(query_x, qry_ei, params)
    classes = jnp.unique(support_y)
    protos = jnp.stack([sup_feat[support_y == c].mean(axis=0) for c in classes])
    d = jnp.sqrt(jnp.sum((qry_feat[:, None, :] - protos[None, :, :]) ** 2, axis=-1))
    return -d


def init_params(key, in_channels, hidden, out_channels, num_layers=3):
    params = {"w_layers": [], "b_layers": [],
              "bn_gamma": [], "bn_beta": [], "bn_mean": [], "bn_var": []}
    for i in range(num_layers):
        d_in = in_channels if i == 0 else hidden
        key, k1, k2, k3, k4, k5, k6 = jax.random.split(key, 7)
        params["w_layers"].append(0.1 * jax.random.normal(k1, (d_in, hidden), jnp.float32))
        params["b_layers"].append(0.1 * jax.random.normal(k2, (hidden,), jnp.float32))
        params["bn_gamma"].append(1.0 + 0.1 * jax.random.normal(k3, (hidden,), jnp.float32))
        params["bn_beta"].append(0.1 * jax.random.normal(k4, (hidden,), jnp.float32))
        params["bn_mean"].append(0.1 * jax.random.normal(k5, (hidden,), jnp.float32))
        params["bn_var"].append(jax.random.uniform(k6, (hidden,), jnp.float32, 0.5, 1.5))
    key, k1, k2, k3, k4, k5, k6 = jax.random.split(key, 7)
    params["w_res"] = 0.1 * jax.random.normal(k1, (in_channels, hidden), jnp.float32)
    params["b_res"] = 0.1 * jax.random.normal(k2, (hidden,), jnp.float32)
    params["wl1"] = 0.1 * jax.random.normal(k3, (hidden, hidden), jnp.float32)
    params["bl1"] = 0.1 * jax.random.normal(k4, (hidden,), jnp.float32)
    params["wl2"] = 0.1 * jax.random.normal(k5, (hidden, out_channels), jnp.float32)
    params["bl2"] = 0.1 * jax.random.normal(k6, (out_channels,), jnp.float32)
    return params


if __name__ == "__main__":
    IN_CHANNELS, HIDDEN, OUT_CHANNELS = 16, 32, 8
    N_NODES, N_CLASSES = 16, 4

    key = jax.random.PRNGKey(0)
    key, ks, kq = jax.random.split(key, 3)
    support_x = jax.random.normal(ks, (N_NODES, IN_CHANNELS), jnp.float32)
    query_x = jax.random.normal(kq, (N_NODES, IN_CHANNELS), jnp.float32)
    support_y = jnp.arange(N_NODES, dtype=jnp.int32) % N_CLASSES

    # deterministic bidirectional ring graphs (no duplicate edges, no self loops)
    src = jnp.arange(N_NODES, dtype=jnp.int32)
    dst1 = (src + 1) % N_NODES
    dst2 = (src + 2) % N_NODES
    support_edge_index = jnp.stack([jnp.concatenate([src, dst1]),
                                    jnp.concatenate([dst1, src])], axis=0)   # (2, 32)
    query_edge_index = jnp.stack([jnp.concatenate([src, dst2]),
                                  jnp.concatenate([dst2, src])], axis=0)     # (2, 32)

    params = init_params(key, IN_CHANNELS, HIDDEN, OUT_CHANNELS)

    logits = protonet_forward(support_x, support_y, query_x,
                              support_edge_index, query_edge_index, params,
                              n_classes=N_CLASSES)
    logits = jax.block_until_ready(logits)
    assert logits.shape == (N_NODES, N_CLASSES)

    # matched-precision reference (identical math / casts, lowered by XLA)
    ref_matched = protonet_reference_matched(support_x, support_y, query_x,
                                             support_edge_index, query_edge_index,
                                             params, N_CLASSES)
    # pure f32 reference (eval-mode PyTorch semantics), loose tolerance due to bf16 matmuls
    ref_f32 = protonet_reference_f32(support_x, support_y, query_x,
                                     support_edge_index, query_edge_index, params)

    assert jnp.allclose(logits, ref_matched, rtol=5e-3, atol=5e-3), \
        float(jnp.max(jnp.abs(logits - ref_matched)))
    assert jnp.allclose(logits, ref_f32, rtol=1e-1, atol=1e-1), \
        float(jnp.max(jnp.abs(logits - ref_f32)))

    print("KERNEL_OK")
</pallas_src>

<mosaic_0001>
module attributes {stable_mosaic.version = 11 : i64} {
  func.func private @main(%arg0: i32) attributes {dimension_semantics = [#tpu.dimension_semantics<core_parallel>], iteration_bounds = array<i64: 2>, tpu.core_type = #tpu.core_type<sc_scalar_subcore>, window_params = []} {
    return
  }
}

module attributes {stable_mosaic.version = 11 : i64} {
  func.func private @main(%arg0: i32) attributes {dimension_semantics = [#tpu.dimension_semantics<core_parallel>], iteration_bounds = array<i64: 2>, tpu.core_type = #tpu.core_type<sc_scalar_subcore>, window_params = []} {
    return
  }
}

module attributes {stable_mosaic.version = 11 : i64} {
  func.func @protonet_fused_kernel(%arg0: memref<32x32xbf16, #tpu.memory_space<vmem>>, %arg1: memref<32x128xbf16, #tpu.memory_space<vmem>>, %arg2: memref<128x128xbf16, #tpu.memory_space<vmem>>, %arg3: memref<1x128xf32, #tpu.memory_space<vmem>>, %arg4: memref<1x128xf32, #tpu.memory_space<vmem>>, %arg5: memref<128x128xbf16, #tpu.memory_space<vmem>>, %arg6: memref<1x128xf32, #tpu.memory_space<vmem>>, %arg7: memref<1x128xf32, #tpu.memory_space<vmem>>, %arg8: memref<128x128xbf16, #tpu.memory_space<vmem>>, %arg9: memref<1x128xf32, #tpu.memory_space<vmem>>, %arg10: memref<1x128xf32, #tpu.memory_space<vmem>>, %arg11: memref<128x128xbf16, #tpu.memory_space<vmem>>, %arg12: memref<1x128xf32, #tpu.memory_space<vmem>>, %arg13: memref<128x128xbf16, #tpu.memory_space<vmem>>, %arg14: memref<1x128xf32, #tpu.memory_space<vmem>>, %arg15: memref<128x128xbf16, #tpu.memory_space<vmem>>, %arg16: memref<1x128xf32, #tpu.memory_space<vmem>>, %arg17: memref<128x32xbf16, #tpu.memory_space<vmem>>, %arg18: memref<16x128xf32, #tpu.memory_space<vmem>>) attributes {dimension_semantics = [], scalar_prefetch = 0 : i64, scratch_operands = 0 : i64, tpu.core_type = #tpu.core_type<tc>} {
    %c0 = arith.constant 0 : index
    %c0_0 = arith.constant 0 : index
    %0 = vector.load %arg0[%c0, %c0_0] : memref<32x32xbf16, #tpu.memory_space<vmem>>, vector<32x32xbf16>
    %c0_1 = arith.constant 0 : index
    %c0_2 = arith.constant 0 : index
    %1 = vector.load %arg1[%c0_1, %c0_2] : memref<32x128xbf16, #tpu.memory_space<vmem>>, vector<32x128xbf16>
    %c0_3 = arith.constant 0 : index
    %c0_4 = arith.constant 0 : index
    %2 = vector.load %arg2[%c0_3, %c0_4] : memref<128x128xbf16, #tpu.memory_space<vmem>>, vector<128x128xbf16>
    %c0_5 = arith.constant 0 : index
    %c0_6 = arith.constant 0 : index
    %3 = vector.load %arg3[%c0_5, %c0_6] : memref<1x128xf32, #tpu.memory_space<vmem>>, vector<1x128xf32>
    %c0_7 = arith.constant 0 : index
    %c0_8 = arith.constant 0 : index
    %4 = vector.load %arg4[%c0_7, %c0_8] : memref<1x128xf32, #tpu.memory_space<vmem>>, vector<1x128xf32>
    %c0_9 = arith.constant 0 : index
    %c0_10 = arith.constant 0 : index
    %5 = vector.load %arg5[%c0_9, %c0_10] : memref<128x128xbf16, #tpu.memory_space<vmem>>, vector<128x128xbf16>
    %c0_11 = arith.constant 0 : index
    %c0_12 = arith.constant 0 : index
    %6 = vector.load %arg6[%c0_11, %c0_12] : memref<1x128xf32, #tpu.memory_space<vmem>>, vector<1x128xf32>
    %c0_13 = arith.constant 0 : index
    %c0_14 = arith.constant 0 : index
    %7 = vector.load %arg7[%c0_13, %c0_14] : memref<1x128xf32, #tpu.memory_space<vmem>>, vector<1x128xf32>
    %c0_15 = arith.constant 0 : index
    %c0_16 = arith.constant 0 : index
    %8 = vector.load %arg8[%c0_15, %c0_16] : memref<128x128xbf16, #tpu.memory_space<vmem>>, vector<128x128xbf16>
    %c0_17 = arith.constant 0 : index
    %c0_18 = arith.constant 0 : index
    %9 = vector.load %arg9[%c0_17, %c0_18] : memref<1x128xf32, #tpu.memory_space<vmem>>, vector<1x128xf32>
    %c0_19 = arith.constant 0 : index
    %c0_20 = arith.constant 0 : index
    %10 = vector.load %arg10[%c0_19, %c0_20] : memref<1x128xf32, #tpu.memory_space<vmem>>, vector<1x128xf32>
    %c0_21 = arith.constant 0 : index
    %c0_22 = arith.constant 0 : index
    %11 = vector.load %arg11[%c0_21, %c0_22] : memref<128x128xbf16, #tpu.memory_space<vmem>>, vector<128x128xbf16>
    %c0_23 = arith.constant 0 : index
    %c0_24 = arith.constant 0 : index
    %12 = vector.load %arg12[%c0_23, %c0_24] : memref<1x128xf32, #tpu.memory_space<vmem>>, vector<1x128xf32>
    %c0_25 = arith.constant 0 : index
    %c0_26 = arith.constant 0 : index
    %13 = vector.load %arg13[%c0_25, %c0_26] : memref<128x128xbf16, #tpu.memory_space<vmem>>, vector<128x128xbf16>
    %c0_27 = arith.constant 0 : index
    %c0_28 = arith.constant 0 : index
    %14 = vector.load %arg14[%c0_27, %c0_28] : memref<1x128xf32, #tpu.memory_space<vmem>>, vector<1x128xf32>
    %c0_29 = arith.constant 0 : index
    %c0_30 = arith.constant 0 : index
    %15 = vector.load %arg15[%c0_29, %c0_30] : memref<128x128xbf16, #tpu.memory_space<vmem>>, vector<128x128xbf16>
    %c0_31 = arith.constant 0 : index
    %c0_32 = arith.constant 0 : index
    %16 = vector.load %arg16[%c0_31, %c0_32] : memref<1x128xf32, #tpu.memory_space<vmem>>, vector<1x128xf32>
    %c0_33 = arith.constant 0 : index
    %c0_34 = arith.constant 0 : index
    %17 = vector.load %arg17[%c0_33, %c0_34] : memref<128x32xbf16, #tpu.memory_space<vmem>>, vector<128x32xbf16>
    %cst = arith.constant dense<0.000000e+00> : vector<32x128xf32>
    %18 = tpu.matmul %1, %2, %cst {dimension_numbers = #tpu.dot_dimension_numbers<[1], [0], [0], [1], [0, 0, 1, 1], [], []>} : vector<32x128xbf16>, vector<128x128xbf16>, vector<32x128xf32> -> vector<32x128xf32>
    %19 = arith.truncf %18 : vector<32x128xf32> to vector<32x128xbf16>
    %cst_35 = arith.constant dense<0.000000e+00> : vector<32x128xf32>
    %20 = tpu.matmul %0, %19, %cst_35 {dimension_numbers = #tpu.dot_dimension_numbers<[1], [0], [0], [1], [0, 0, 1, 1], [], []>} : vector<32x32xbf16>, vector<32x128xbf16>, vector<32x128xf32> -> vector<32x128xf32>
    %21 = vector.broadcast %3 : vector<1x128xf32> to vector<32x128xf32>
    %22 = arith.mulf %20, %21 : vector<32x128xf32>
    %23 = vector.broadcast %4 : vector<1x128xf32> to vector<32x128xf32>
    %24 = arith.addf %22, %23 : vector<32x128xf32>
    %cst_36 = arith.constant 0.000000e+00 : f32
    %25 = vector.broadcast %cst_36 : f32 to vector<32x128xf32>
    %26 = arith.maximumf %24, %25 : vector<32x128xf32>
    %cst_37 = arith.constant dense<0.000000e+00> : vector<32x128xf32>
    %27 = tpu.matmul %1, %11, %cst_37 {dimension_numbers = #tpu.dot_dimension_numbers<[1], [0], [0], [1], [0, 0, 1, 1], [], []>} : vector<32x128xbf16>, vector<128x128xbf16>, vector<32x128xf32> -> vector<32x128xf32>
    %28 = arith.addf %26, %27 : vector<32x128xf32>
    %29 = vector.broadcast %12 : vector<1x128xf32> to vector<32x128xf32>
    %30 = arith.addf %28, %29 : vector<32x128xf32>
    %31 = arith.truncf %30 : vector<32x128xf32> to vector<32x128xbf16>
    %cst_38 = arith.constant dense<0.000000e+00> : vector<32x128xf32>
    %32 = tpu.matmul %31, %5, %cst_38 {dimension_numbers = #tpu.dot_dimension_numbers<[1], [0], [0], [1], [0, 0, 1, 1], [], []>} : vector<32x128xbf16>, vector<128x128xbf16>, vector<32x128xf32> -> vector<32x128xf32>
    %33 = arith.truncf %32 : vector<32x128xf32> to vector<32x128xbf16>
    %cst_39 = arith.constant dense<0.000000e+00> : vector<32x128xf32>
    %34 = tpu.matmul %0, %33, %cst_39 {dimension_numbers = #tpu.dot_dimension_numbers<[1], [0], [0], [1], [0, 0, 1, 1], [], []>} : vector<32x32xbf16>, vector<32x128xbf16>, vector<32x128xf32> -> vector<32x128xf32>
    %35 = vector.broadcast %6 : vector<1x128xf32> to vector<32x128xf32>
    %36 = arith.mulf %34, %35 : vector<32x128xf32>
    %37 = vector.broadcast %7 : vector<1x128xf32> to vector<32x128xf32>
    %38 = arith.addf %36, %37 : vector<32x128xf32>
    %cst_40 = arith.constant 0.000000e+00 : f32
    %39 = vector.broadcast %cst_40 : f32 to vector<32x128xf32>
    %40 = arith.maximumf %38, %39 : vector<32x128xf32>
    %41 = arith.truncf %40 : vector<32x128xf32> to vector<32x128xbf16>
    %cst_41 = arith.constant dense<0.000000e+00> : vector<32x128xf32>
    %42 = tpu.matmul %41, %8, %cst_41 {dimension_numbers = #tpu.dot_dimension_numbers<[1], [0], [0], [1], [0, 0, 1, 1], [], []>} : vector<32x128xbf16>, vector<128x128xbf16>, vector<32x128xf32> -> vector<32x128xf32>
    %43 = arith.truncf %42 : vector<32x128xf32> to vector<32x128xbf16>
    %cst_42 = arith.constant dense<0.000000e+00> : vector<32x128xf32>
    %44 = tpu.matmul %0, %43, %cst_42 {dimension_numbers = #tpu.dot_dimension_numbers<[1], [0], [0], [1], [0, 0, 1, 1], [], []>} : vector<32x32xbf16>, vector<32x128xbf16>, vector<32x128xf32> -> vector<32x128xf32>
    %45 = vector.broadcast %9 : vector<1x128xf32> to vector<32x128xf32>
    %46 = arith.mulf %44, %45 : vector<32x128xf32>
    %47 = vector.broadcast %10 : vector<1x128xf32> to vector<32x128xf32>
    %48 = arith.addf %46, %47 : vector<32x128xf32>
    %cst_43 = arith.constant 0.000000e+00 : f32
    %49 = vector.broadcast %cst_43 : f32 to vector<32x128xf32>
    %50 = arith.maximumf %48, %49 : vector<32x128xf32>
    %51 = arith.truncf %50 : vector<32x128xf32> to vector<32x128xbf16>
    %cst_44 = arith.constant dense<0.000000e+00> : vector<32x128xf32>
    %52 = tpu.matmul %51, %13, %cst_44 {dimension_numbers = #tpu.dot_dimension_numbers<[1], [0], [0], [1], [0, 0, 1, 1], [], []>} : vector<32x128xbf16>, vector<128x128xbf16>, vector<32x128xf32> -> vector<32x128xf32>
    %53 = vector.broadcast %14 : vector<1x128xf32> to vector<32x128xf32>
    %54 = arith.addf %52, %53 : vector<32x128xf32>
    %cst_45 = arith.constant 0.000000e+00 : f32
    %55 = vector.broadcast %cst_45 : f32 to vector<32x128xf32>
    %56 = arith.maximumf %54, %55 : vector<32x128xf32>
    %57 = arith.truncf %56 : vector<32x128xf32> to vector<32x128xbf16>
    %cst_46 = arith.constant dense<0.000000e+00> : vector<32x128xf32>
    %58 = tpu.matmul %57, %15, %cst_46 {dimension_numbers = #tpu.dot_dimension_numbers<[1], [0], [0], [1], [0, 0, 1, 1], [], []>} : vector<32x128xbf16>, vector<128x128xbf16>, vector<32x128xf32> -> vector<32x128xf32>
    %59 = vector.broadcast %16 : vector<1x128xf32> to vector<32x128xf32>
    %60 = arith.addf %58, %59 : vector<32x128xf32>
    %61 = arith.truncf %60 : vector<32x128xf32> to vector<32x128xbf16>
    %cst_47 = arith.constant dense<0.000000e+00> : vector<128x128xf32>
    %62 = tpu.matmul %17, %61, %cst_47 {dimension_numbers = #tpu.dot_dimension_numbers<[1], [0], [0], [1], [0, 0, 1, 1], [], []>} : vector<128x32xbf16>, vector<32x128xbf16>, vector<128x128xf32> -> vector<128x128xf32>
    %63 = arith.truncf %62 : vector<128x128xf32> to vector<128x128xbf16>
    %64 = vector.extract_strided_slice %60 {offsets = [16, 0], sizes = [16, 128], strides = [1, 1]} : vector<32x128xf32> to vector<16x128xf32>
    %65 = vector.extract_strided_slice %61 {offsets = [16, 0], sizes = [16, 128], strides = [1, 1]} : vector<32x128xbf16> to vector<16x128xbf16>
    %cst_48 = arith.constant dense<0.000000e+00> : vector<16x128xf32>
    %66 = tpu.matmul %65, %63, %cst_48 {dimension_numbers = #tpu.dot_dimension_numbers<[1], [1], [0], [0], [0, 0, 1, 0], [], []>} : vector<16x128xbf16>, vector<128x128xbf16>, vector<16x128xf32> -> vector<16x128xf32>
    %67 = arith.mulf %64, %64 : vector<16x128xf32>
    %cst_49 = arith.constant dense<0.000000e+00> : vector<16xf32>
    %68 = vector.multi_reduction <add>, %67, %cst_49 [1] : vector<16x128xf32> to vector<16xf32>
    %69 = vector.shape_cast %68 : vector<16xf32> to vector<16x1xf32>
    %cst_50 = arith.constant 1.000000e+00 : bf16
    %70 = vector.broadcast %cst_50 : bf16 to vector<1x128xbf16>
    %71 = arith.mulf %62, %62 : vector<128x128xf32>
    %72 = arith.truncf %71 : vector<128x128xf32> to vector<128x128xbf16>
    %cst_51 = arith.constant dense<0.000000e+00> : vector<1x128xf32>
    %73 = tpu.matmul %70, %72, %cst_51 {dimension_numbers = #tpu.dot_dimension_numbers<[1], [1], [0], [0], [0, 0, 1, 0], [], []>} : vector<1x128xbf16>, vector<128x128xbf16>, vector<1x128xf32> -> vector<1x128xf32>
    %74 = vector.broadcast %69 : vector<16x1xf32> to vector<16x128xf32>
    %75 = vector.broadcast %73 : vector<1x128xf32> to vector<16x128xf32>
    %76 = arith.addf %74, %75 : vector<16x128xf32>
    %cst_52 = arith.constant 2.000000e+00 : f32
    %77 = vector.broadcast %cst_52 : f32 to vector<16x128xf32>
    %78 = arith.mulf %77, %66 : vector<16x128xf32>
    %79 = arith.subf %76, %78 : vector<16x128xf32>
    %cst_53 = arith.constant 0.000000e+00 : f32
    %80 = vector.broadcast %cst_53 : f32 to vector<16x128xf32>
    %81 = arith.maximumf %79, %80 : vector<16x128xf32>
    %82 = math.sqrt %81 : vector<16x128xf32>
    %cst_54 = arith.constant 0.000000e+00 : f32
    %83 = vector.broadcast %cst_54 : f32 to vector<16x128xf32>
    %84 = arith.subf %83, %82 : vector<16x128xf32>
    %c0_55 = arith.constant 0 : index
    %c0_56 = arith.constant 0 : index
    %85 = vector.load %arg18[%c0_55, %c0_56] : memref<16x128xf32, #tpu.memory_space<vmem>>, vector<16x128xf32>
    tpu.vector_store %arg18[%c0_55, %c0_56], %84 {strides = array<i32>} : memref<16x128xf32, #tpu.memory_space<vmem>>, vector<16x128xf32>,
    return
  }
}

</mosaic_0001>

<llo_original>
// kernel: protonet_forward.1
$region0: #{protonet_forward.1}
  #allocation0 [shape = 'u32[]', space=smem, size = 0x4, offset = 0x4, fixed_abs, tag = 'smem constant byte address 0x4 - core index']
  #allocation1 [shape = 'u32[144,128]{1,0:T(1,128)}', space=vmem, size = 0x12000, scoped, tag = 'internal scratch']
  %s0 = inlined_call_operand.vmem [shape: bf16[32,32], index: 0, kind: input, shape index: {}]
  %s1 = inlined_call_operand.vmem [shape: bf16[32,128], index: 1, kind: input, shape index: {}]
  %s2 = inlined_call_operand.vmem [shape: bf16[128,128], index: 2, kind: input, shape index: {}]
  %s3 = inlined_call_operand.vmem [shape: f32[1,128], index: 3, kind: input, shape index: {}]
  %s4 = inlined_call_operand.vmem [shape: f32[1,128], index: 4, kind: input, shape index: {}]
  %s5 = inlined_call_operand.vmem [shape: bf16[128,128], index: 5, kind: input, shape index: {}]
  %s6 = inlined_call_operand.vmem [shape: f32[1,128], index: 6, kind: input, shape index: {}]
  %s7 = inlined_call_operand.vmem [shape: f32[1,128], index: 7, kind: input, shape index: {}]
  %s8 = inlined_call_operand.vmem [shape: bf16[128,128], index: 8, kind: input, shape index: {}]
  %s9 = inlined_call_operand.vmem [shape: f32[1,128], index: 9, kind: input, shape index: {}]
  %s10 = inlined_call_operand.vmem [shape: f32[1,128], index: 10, kind: input, shape index: {}]
  %s11 = inlined_call_operand.vmem [shape: bf16[128,128], index: 11, kind: input, shape index: {}]
  %s12 = inlined_call_operand.vmem [shape: f32[1,128], index: 12, kind: input, shape index: {}]
  %s13 = inlined_call_operand.vmem [shape: bf16[128,128], index: 13, kind: input, shape index: {}]
  %s14 = inlined_call_operand.vmem [shape: f32[1,128], index: 14, kind: input, shape index: {}]
  %s15 = inlined_call_operand.vmem [shape: bf16[128,128], index: 15, kind: input, shape index: {}]
  %s16 = inlined_call_operand.vmem [shape: f32[1,128], index: 16, kind: input, shape index: {}]
  %s17 = inlined_call_operand.vmem [shape: bf16[128,32], index: 17, kind: input, shape index: {}]
  %s18 = inlined_call_operand.vmem [shape: f32[16,128], index: 18, kind: output, shape index: {}]
  %s19 = sld [smem:[#allocation0]]
  $region82: #{protonet_forward.1} parent=0
    _
  %s21 = ssub.s32 1, %s19
  %s22 = scalar_select 0, %s21, %s19
  // Predicated region
  $region2: #{protonet_forward.1} parent=0 // pred_check
    _
  $region3: #{protonet_forward.1} parent=0 // pred_check_branch
    %24 = sbr.rel (0) target = $region5
  $region4: #{protonet_forward.1} parent=0 // pred_region
    _
  $region5: #{protonet_forward.1} parent=0 // pred_fallthru
    _
  // Predicated region
  $region6: #{protonet_forward.1} parent=0 // pred_check
    _
  $region7: #{protonet_forward.1} parent=0 // pred_check_branch
    %26 = sbr.rel (0) target = $region9
  $region8: #{protonet_forward.1} parent=0 // pred_region
    _
  $region9: #{protonet_forward.1} parent=0 // pred_fallthru
    _
  // Predicated region
  $region10: #{protonet_forward.1} parent=0 // pred_check
    _
  $region11: #{protonet_forward.1} parent=0 // pred_check_branch
    %28 = sbr.rel (0) target = $region13
  $region12: #{protonet_forward.1} parent=0 // pred_region
    _
  $region13: #{protonet_forward.1} parent=0 // pred_fallthru
    _
  // Predicated region
  $region14: #{protonet_forward.1} parent=0 // pred_check
    _
  $region15: #{protonet_forward.1} parent=0 // pred_check_branch
    %30 = sbr.rel (0) target = $region17
  $region16: #{protonet_forward.1} parent=0 // pred_region
    _
  $region17: #{protonet_forward.1} parent=0 // pred_fallthru
    _
  // Predicated region
  $region18: #{protonet_forward.1} parent=0 // pred_check
    _
  $region19: #{protonet_forward.1} parent=0 // pred_check_branch
    %32 = sbr.rel (0) target = $region21
  $region20: #{protonet_forward.1} parent=0 // pred_region
    _
  $region21: #{protonet_forward.1} parent=0 // pred_fallthru
    _
  // Predicated region
  $region22: #{protonet_forward.1} parent=0 // pred_check
    _
  $region23: #{protonet_forward.1} parent=0 // pred_check_branch
    %34 = sbr.rel (0) target = $region25
  $region24: #{protonet_forward.1} parent=0 // pred_region
    _
  $region25: #{protonet_forward.1} parent=0 // pred_fallthru
    _
  // Predicated region
  $region26: #{protonet_forward.1} parent=0 // pred_check
    _
  $region27: #{protonet_forward.1} parent=0 // pred_check_branch
    %36 = sbr.rel (0) target = $region29
  $region28: #{protonet_forward.1} parent=0 // pred_region
    _
  $region29: #{protonet_forward.1} parent=0 // pred_fallthru
    _
  // Predicated region
  $region30: #{protonet_forward.1} parent=0 // pred_check
    _
  $region31: #{protonet_forward.1} parent=0 // pred_check_branch
    %38 = sbr.rel (0) target = $region33
  $region32: #{protonet_forward.1} parent=0 // pred_region
    _
  $region33: #{protonet_forward.1} parent=0 // pred_fallthru
    _
  // Predicated region
  $region34: #{protonet_forward.1} parent=0 // pred_check
    _
  $region35: #{protonet_forward.1} parent=0 // pred_check_branch
    %40 = sbr.rel (0) target = $region37
  $region36: #{protonet_forward.1} parent=0 // pred_region
    _
  $region37: #{protonet_forward.1} parent=0 // pred_fallthru
    _
  // Predicated region
  $region38: #{protonet_forward.1} parent=0 // pred_check
    _
  $region39: #{protonet_forward.1} parent=0 // pred_check_branch
    %42 = sbr.rel (0) target = $region41
  $region40: #{protonet_forward.1} parent=0 // pred_region
    _
  $region41: #{protonet_forward.1} parent=0 // pred_fallthru
    _
  // Predicated region
  $region42: #{protonet_forward.1} parent=0 // pred_check
    _
  $region43: #{protonet_forward.1} parent=0 // pred_check_branch
    %44 = sbr.rel (0) target = $region45
  $region44: #{protonet_forward.1} parent=0 // pred_region
    _
  $region45: #{protonet_forward.1} parent=0 // pred_fallthru
    _
  // Predicated region
  $region46: #{protonet_forward.1} parent=0 // pred_check
    _
  $region47: #{protonet_forward.1} parent=0 // pred_check_branch
    %46 = sbr.rel (0) target = $region49
  $region48: #{protonet_forward.1} parent=0 // pred_region
    _
  $region49: #{protonet_forward.1} parent=0 // pred_fallthru
    _
  // Predicated region
  $region50: #{protonet_forward.1} parent=0 // pred_check
    _
  $region51: #{protonet_forward.1} parent=0 // pred_check_branch
    %48 = sbr.rel (0) target = $region53
  $region52: #{protonet_forward.1} parent=0 // pred_region
    _
  $region53: #{protonet_forward.1} parent=0 // pred_fallthru
    _
  // Predicated region
  $region54: #{protonet_forward.1} parent=0 // pred_check
    _
  $region55: #{protonet_forward.1} parent=0 // pred_check_branch
    %50 = sbr.rel (0) target = $region57
  $region56: #{protonet_forward.1} parent=0 // pred_region
    _
  $region57: #{protonet_forward.1} parent=0 // pred_fallthru
    _
  // Predicated region
  $region58: #{protonet_forward.1} parent=0 // pred_check
    _
  $region59: #{protonet_forward.1} parent=0 // pred_check_branch
    %52 = sbr.rel (0) target = $region61
  $region60: #{protonet_forward.1} parent=0 // pred_region
    _
  $region61: #{protonet_forward.1} parent=0 // pred_fallthru
    _
  // Predicated region
  $region62: #{protonet_forward.1} parent=0 // pred_check
    _
  $region63: #{protonet_forward.1} parent=0 // pred_check_branch
    %54 = sbr.rel (0) target = $region65
  $region64: #{protonet_forward.1} parent=0 // pred_region
    _
  $region65: #{protonet_forward.1} parent=0 // pred_fallthru
    _
  // Predicated region
  $region66: #{protonet_forward.1} parent=0 // pred_check
    _
  $region67: #{protonet_forward.1} parent=0 // pred_check_branch
    %56 = sbr.rel (0) target = $region69
  $region68: #{protonet_forward.1} parent=0 // pred_region
    _
  $region69: #{protonet_forward.1} parent=0 // pred_fallthru
    _
  // Predicated region
  $region70: #{protonet_forward.1} parent=0 // pred_check
    _
  $region71: #{protonet_forward.1} parent=0 // pred_check_branch
    %58 = sbr.rel (0) target = $region73
  $region72: #{protonet_forward.1} parent=0 // pred_region
    _
  $region73: #{protonet_forward.1} parent=0 // pred_fallthru
    _
  %v61 = vld [vmem:[%s0] sm:$0xf]
  %v62 = vld [vmem:[%s0 + $0x4] sm:$0xf]
  %v63 = vld [vmem:[%s0 + $0x8] sm:$0xf]
  %v64 = vld [vmem:[%s0 + $0xc] sm:$0xf]
  %v65 = vld [vmem:[%s1] sm:$0xf]
  %v66 = vld [vmem:[%s1 + $0x4] sm:$0xf]
  %v67 = vld [vmem:[%s1 + $0x8] sm:$0xf]
  %v68 = vld [vmem:[%s1 + $0xc] sm:$0xf]
  %v69 = vld [vmem:[%s2] sm:$0xf]
  %v70 = vld [vmem:[%s2 + $0x4] sm:$0xf]
  %v71 = vld [vmem:[%s2 + $0x8] sm:$0xf]
  %v72 = vld [vmem:[%s2 + $0xc] sm:$0xf]
  %v73 = vld [vmem:[%s2 + $0x10] sm:$0xf]
  %v74 = vld [vmem:[%s2 + $0x14] sm:$0xf]
  %v75 = vld [vmem:[%s2 + $0x18] sm:$0xf]
  %v76 = vld [vmem:[%s2 + $0x1c] sm:$0xf]
  %v77 = vld [vmem:[%s2 + $0x20] sm:$0xf]
  %v78 = vld [vmem:[%s2 + $0x24] sm:$0xf]
  %v79 = vld [vmem:[%s2 + $0x28] sm:$0xf]
  %v80 = vld [vmem:[%s2 + $0x2c] sm:$0xf]
  %v81 = vld [vmem:[%s2 + $0x30] sm:$0xf]
  %v82 = vld [vmem:[%s2 + $0x34] sm:$0xf]
  %v83 = vld [vmem:[%s2 + $0x38] sm:$0xf]
  %v84 = vld [vmem:[%s2 + $0x3c] sm:$0xf]
  %v85 = vld [vmem:[%s3] sm:$0x1]
  %v86 = vld [vmem:[%s4] sm:$0x1]
  %v87 = vld [vmem:[%s5] sm:$0xf]
  %v88 = vld [vmem:[%s5 + $0x4] sm:$0xf]
  %v89 = vld [vmem:[%s5 + $0x8] sm:$0xf]
  %v90 = vld [vmem:[%s5 + $0xc] sm:$0xf]
  %v91 = vld [vmem:[%s5 + $0x10] sm:$0xf]
  %v92 = vld [vmem:[%s5 + $0x14] sm:$0xf]
  %v93 = vld [vmem:[%s5 + $0x18] sm:$0xf]
  %v94 = vld [vmem:[%s5 + $0x1c] sm:$0xf]
  %v95 = vld [vmem:[%s5 + $0x20] sm:$0xf]
  %v96 = vld [vmem:[%s5 + $0x24] sm:$0xf]
  %v97 = vld [vmem:[%s5 + $0x28] sm:$0xf]
  %v98 = vld [vmem:[%s5 + $0x2c] sm:$0xf]
  %v99 = vld [vmem:[%s5 + $0x30] sm:$0xf]
  %v100 = vld [vmem:[%s5 + $0x34] sm:$0xf]
  %v101 = vld [vmem:[%s5 + $0x38] sm:$0xf]
  %v102 = vld [vmem:[%s5 + $0x3c] sm:$0xf]
  %v103 = vld [vmem:[%s6] sm:$0x1]
  %v104 = vld [vmem:[%s7] sm:$0x1]
  %v105 = vld [vmem:[%s8] sm:$0xf]
  %v106 = vld [vmem:[%s8 + $0x4] sm:$0xf]
  %v107 = vld [vmem:[%s8 + $0x8] sm:$0xf]
  %v108 = vld [vmem:[%s8 + $0xc] sm:$0xf]
  %v109 = vld [vmem:[%s8 + $0x10] sm:$0xf]
  %v110 = vld [vmem:[%s8 + $0x14] sm:$0xf]
  %v111 = vld [vmem:[%s8 + $0x18] sm:$0xf]
  %v112 = vld [vmem:[%s8 + $0x1c] sm:$0xf]
  %v113 = vld [vmem:[%s8 + $0x20] sm:$0xf]
  %v114 = vld [vmem:[%s8 + $0x24] sm:$0xf]
  %v115 = vld [vmem:[%s8 + $0x28] sm:$0xf]
  %v116 = vld [vmem:[%s8 + $0x2c] sm:$0xf]
  %v117 = vld [vmem:[%s8 + $0x30] sm:$0xf]
  %v118 = vld [vmem:[%s8 + $0x34] sm:$0xf]
  %v119 = vld [vmem:[%s8 + $0x38] sm:$0xf]
  %v120 = vld [vmem:[%s8 + $0x3c] sm:$0xf]
  %v121 = vld [vmem:[%s9] sm:$0x1]
  %v122 = vld [vmem:[%s10] sm:$0x1]
  %v123 = vld [vmem:[%s11] sm:$0xf]
  %v124 = vld [vmem:[%s11 + $0x4] sm:$0xf]
  %v125 = vld [vmem:[%s11 + $0x8] sm:$0xf]
  %v126 = vld [vmem:[%s11 + $0xc] sm:$0xf]
  %v127 = vld [vmem:[%s11 + $0x10] sm:$0xf]
  %v128 = vld [vmem:[%s11 + $0x14] sm:$0xf]
  %v129 = vld [vmem:[%s11 + $0x18] sm:$0xf]
  %v130 = vld [vmem:[%s11 + $0x1c] sm:$0xf]
  %v131 = vld [vmem:[%s11 + $0x20] sm:$0xf]
  %v132 = vld [vmem:[%s11 + $0x24] sm:$0xf]
  %v133 = vld [vmem:[%s11 + $0x28] sm:$0xf]
  %v134 = vld [vmem:[%s11 + $0x2c] sm:$0xf]
  %v135 = vld [vmem:[%s11 + $0x30] sm:$0xf]
  %v136 = vld [vmem:[%s11 + $0x34] sm:$0xf]
  %v137 = vld [vmem:[%s11 + $0x38] sm:$0xf]
  %v138 = vld [vmem:[%s11 + $0x3c] sm:$0xf]
  %v139 = vld [vmem:[%s12] sm:$0x1]
  %v140 = vld [vmem:[%s13] sm:$0xf]
  %v141 = vld [vmem:[%s13 + $0x4] sm:$0xf]
  %v142 = vld [vmem:[%s13 + $0x8] sm:$0xf]
  %v143 = vld [vmem:[%s13 + $0xc] sm:$0xf]
  %v144 = vld [vmem:[%s13 + $0x10] sm:$0xf]
  %v145 = vld [vmem:[%s13 + $0x14] sm:$0xf]
  %v146 = vld [vmem:[%s13 + $0x18] sm:$0xf]
  %v147 = vld [vmem:[%s13 + $0x1c] sm:$0xf]
  %v148 = vld [vmem:[%s13 + $0x20] sm:$0xf]
  %v149 = vld [vmem:[%s13 + $0x24] sm:$0xf]
  %v150 = vld [vmem:[%s13 + $0x28] sm:$0xf]
  %v151 = vld [vmem:[%s13 + $0x2c] sm:$0xf]
  %v152 = vld [vmem:[%s13 + $0x30] sm:$0xf]
  %v153 = vld [vmem:[%s13 + $0x34] sm:$0xf]
  %v154 = vld [vmem:[%s13 + $0x38] sm:$0xf]
  %v155 = vld [vmem:[%s13 + $0x3c] sm:$0xf]
  %v156 = vld [vmem:[%s14] sm:$0x1]
  %v157 = vld [vmem:[%s15] sm:$0xf]
  %v158 = vld [vmem:[%s15 + $0x4] sm:$0xf]
  %v159 = vld [vmem:[%s15 + $0x8] sm:$0xf]
  %v160 = vld [vmem:[%s15 + $0xc] sm:$0xf]
  %v161 = vld [vmem:[%s15 + $0x10] sm:$0xf]
  %v162 = vld [vmem:[%s15 + $0x14] sm:$0xf]
  %v163 = vld [vmem:[%s15 + $0x18] sm:$0xf]
  %v164 = vld [vmem:[%s15 + $0x1c] sm:$0xf]
  %v165 = vld [vmem:[%s15 + $0x20] sm:$0xf]
  %v166 = vld [vmem:[%s15 + $0x24] sm:$0xf]
  %v167 = vld [vmem:[%s15 + $0x28] sm:$0xf]
  %v168 = vld [vmem:[%s15 + $0x2c] sm:$0xf]
  %v169 = vld [vmem:[%s15 + $0x30] sm:$0xf]
  %v170 = vld [vmem:[%s15 + $0x34] sm:$0xf]
  %v171 = vld [vmem:[%s15 + $0x38] sm:$0xf]
  %v172 = vld [vmem:[%s15 + $0x3c] sm:$0xf]
  %v173 = vld [vmem:[%s16] sm:$0x1]
  %v174 = vld [vmem:[%s17] sm:$0xf]
  %v175 = vld [vmem:[%s17 + $0x4] sm:$0xf]
  %v176 = vld [vmem:[%s17 + $0x8] sm:$0xf]
  %v177 = vld [vmem:[%s17 + $0xc] sm:$0xf]
  %v178 = vld [vmem:[%s17 + $0x10] sm:$0xf]
  %v179 = vld [vmem:[%s17 + $0x14] sm:$0xf]
  %v180 = vld [vmem:[%s17 + $0x18] sm:$0xf]
  %v181 = vld [vmem:[%s17 + $0x1c] sm:$0xf]
  %v182 = vld [vmem:[%s17 + $0x20] sm:$0xf]
  %v183 = vld [vmem:[%s17 + $0x24] sm:$0xf]
  %v184 = vld [vmem:[%s17 + $0x28] sm:$0xf]
  %v185 = vld [vmem:[%s17 + $0x2c] sm:$0xf]
  %v186 = vld [vmem:[%s17 + $0x30] sm:$0xf]
  %v187 = vld [vmem:[%s17 + $0x34] sm:$0xf]
  %v188 = vld [vmem:[%s17 + $0x38] sm:$0xf]
  %v189 = vld [vmem:[%s17 + $0x3c] sm:$0xf]
  %v194 = vunpack.c.l.b16 %v65
  %v195 = vunpack.c.l.b16 %v66
  %v196 = vunpack.c.l.b16 %v67
  %v197 = vunpack.c.l.b16 %v68
  %v198 = vpack.c.b16 %v195, %v194
  %v199 = vpack.c.b16 %v197, %v196
  %v218 = vunpack.c.l.b16 %v69
  %v219 = vunpack.c.l.b16 %v70
  %v220 = vunpack.c.l.b16 %v71
  %v221 = vunpack.c.l.b16 %v72
  %v222 = vunpack.c.l.b16 %v73
  %v223 = vunpack.c.l.b16 %v74
  %v224 = vunpack.c.l.b16 %v75
  %v225 = vunpack.c.l.b16 %v76
  %v226 = vunpack.c.l.b16 %v77
  %v227 = vunpack.c.l.b16 %v78
  %v228 = vunpack.c.l.b16 %v79
  %v229 = vunpack.c.l.b16 %v80
  %v230 = vunpack.c.l.b16 %v81
  %v231 = vunpack.c.l.b16 %v82
  %v232 = vunpack.c.l.b16 %v83
  %v233 = vunpack.c.l.b16 %v84
  %v234 = vpack.c.b16 %v219, %v218
  %v235 = vpack.c.b16 %v221, %v220
  %v236 = vpack.c.b16 %v223, %v222
  %v237 = vpack.c.b16 %v225, %v224
  %v238 = vpack.c.b16 %v227, %v226
  %v239 = vpack.c.b16 %v229, %v228
  %v240 = vpack.c.b16 %v231, %v230
  %v241 = vpack.c.b16 %v233, %v232
  %250 = vmatprep.subr.bf16.mxu0 0
  %251 = vmatpush1.bf16.msra.mxu0 %v234
  %252 = vmatprep.subr.bf16.mxu0 0
  %253 = vmatpush1.bf16.msra.mxu0 %v235
  %254 = vmatprep.subr.bf16.mxu0 0
  %255 = vmatpush1.bf16.msra.mxu0 %v236
  %256 = vmatprep.subr.bf16.mxu0 0
  %257 = vmatpush1.bf16.msra.mxu0 %v237
  %258 = vmatprep.subr.bf16.mxu0 0
  %259 = vmatpush1.bf16.msra.mxu0 %v238
  %260 = vmatprep.subr.bf16.mxu0 0
  %261 = vmatpush1.bf16.msra.mxu0 %v239
  %262 = vmatprep.subr.bf16.mxu0 0
  %263 = vmatpush1.bf16.msra.mxu0 %v240
  %264 = vmatprep.subr.bf16.mxu0 0
  %265 = vmatpush1.bf16.msra.mxu0 %v241
  %266 = vmatprep.subr.bf16.mxu0 0
  %267 = vmatpush1.bf16.msra.mxu0 0
  %268 = vmatprep.subr.bf16.mxu0 0
  %269 = vmatpush1.bf16.msra.mxu0 0
  %270 = vmatprep.subr.bf16.mxu0 0
  %271 = vmatpush1.bf16.msra.mxu0 0
  %272 = vmatprep.subr.bf16.mxu0 0
  %273 = vmatpush1.bf16.msra.mxu0 0
  %274 = vmatprep.subr.bf16.mxu0 0
  %275 = vmatpush1.bf16.msra.mxu0 0
  %276 = vmatprep.subr.bf16.mxu0 0
  %277 = vmatpush1.bf16.msra.mxu0 0
  %278 = vmatprep.subr.bf16.mxu0 0
  %279 = vmatpush1.bf16.msra.mxu0 0
  %280 = vmatprep.subr.bf16.mxu0 0
  %281 = vmatpush1.bf16.msra.mxu0 0
  %282 = vmatprep.mubr.bf16.mxu0 0
  %283 = vmatmul.mubr.bf16.gmra.mrb[0].mxu0 %v198
  %v284 = vpop.f32.mrb[0].mxu0
  %v285 = vadd.f32 0.0, %v284
  %v286 = vpop.f32.mrb[0].mxu0
  %v287 = vpop.f32.mrb[0].mxu0
  %v288 = vadd.f32 0.0, %v287
  %v289 = vpop.f32.mrb[0].mxu0
  %290 = vmatprep.mubr.bf16.mxu0 0
  %291 = vmatmul.mubr.bf16.gmra.mrb[0].mxu0 %v199
  %v292 = vpop.f32.mrb[0].mxu0
  %v293 = vadd.f32 0.0, %v292
  %v294 = vpop.f32.mrb[0].mxu0
  %v295 = vpop.f32.mrb[0].mxu0
  %v296 = vadd.f32 0.0, %v295
  %v297 = vpop.f32.mrb[0].mxu0
  %298 = vdwg.mxu0
  %v299 = vpack.c.bf16 %v288, %v285
  %v300 = vpack.c.bf16 %v296, %v293
  %v305 = vunpack.c.l.b16 %v61
  %v306 = vunpack.c.l.b16 %v62
  %v307 = vunpack.c.l.b16 %v63
  %v308 = vunpack.c.l.b16 %v64
  %v309 = vpack.c.b16 %v306, %v305
  %v310 = vpack.c.b16 %v308, %v307
  %vm311 = vcmask 261120
  %v313 = vsel %vm311, %v309, 0
  %v316 = vsel %vm311, %v310, 0
  %318 = vmatprep.subr.bf16.mxu0 0
  %319 = vmatpush1.bf16.msra.mxu0 %v299
  %320 = vmatprep.subr.bf16.mxu0 0
  %321 = vmatpush1.bf16.msra.mxu0 %v300
  %322 = vmatprep.subr.bf16.mxu0 0
  %323 = vmatpush1.bf16.msra.mxu0 0
  %324 = vmatprep.subr.bf16.mxu0 0
  %325 = vmatpush1.bf16.msra.mxu0 0
  %326 = vmatprep.subr.bf16.mxu0 0
  %327 = vmatpush1.bf16.msra.mxu0 0
  %328 = vmatprep.subr.bf16.mxu0 0
  %329 = vmatpush1.bf16.msra.mxu0 0
  %330 = vmatprep.subr.bf16.mxu0 0
  %331 = vmatpush1.bf16.msra.mxu0 0
  %332 = vmatprep.subr.bf16.mxu0 0
  %333 = vmatpush1.bf16.msra.mxu0 0
  %334 = vmatprep.subr.bf16.mxu0 0
  %335 = vmatpush1.bf16.msra.mxu0 0
  %336 = vmatprep.subr.bf16.mxu0 0
  %337 = vmatpush1.bf16.msra.mxu0 0
  %338 = vmatprep.subr.bf16.mxu0 0
  %339 = vmatpush1.bf16.msra.mxu0 0
  %340 = vmatprep.subr.bf16.mxu0 0
  %341 = vmatpush1.bf16.msra.mxu0 0
  %342 = vmatprep.subr.bf16.mxu0 0
  %343 = vmatpush1.bf16.msra.mxu0 0
  %344 = vmatprep.subr.bf16.mxu0 0
  %345 = vmatpush1.bf16.msra.mxu0 0
  %346 = vmatprep.subr.bf16.mxu0 0
  %347 = vmatpush1.bf16.msra.mxu0 0
  %348 = vmatprep.subr.bf16.mxu0 0
  %349 = vmatpush1.bf16.msra.mxu0 0
  %350 = vmatprep.mubr.bf16.mxu0 0
  %351 = vmatmul.mubr.bf16.gmra.mrb[0].mxu0 %v313
  %v352 = vpop.f32.mrb[0].mxu0
  %v353 = vadd.f32 0.0, %v352
  %v354 = vpop.f32.mrb[0].mxu0
  %v355 = vpop.f32.mrb[0].mxu0
  %v356 = vadd.f32 0.0, %v355
  %v357 = vpop.f32.mrb[0].mxu0
  %358 = vmatprep.mubr.bf16.mxu0 0
  %359 = vmatmul.mubr.bf16.gmra.mrb[0].mxu0 %v316
  %v360 = vpop.f32.mrb[0].mxu0
  %v361 = vadd.f32 0.0, %v360
  %v362 = vpop.f32.mrb[0].mxu0
  %v363 = vpop.f32.mrb[0].mxu0
  %v364 = vadd.f32 0.0, %v363
  %v365 = vpop.f32.mrb[0].mxu0
  %366 = vdwg.mxu0
  %v368 = vlaneseq
  %v369 = vshrl.u32 %v368, 7
  %v370 = vsub.s32 0, %v369
  %v371 = vrot.slane %v85, %v370
  %v373 = vmul.f32 %v353, %v371
  %v374 = vmul.f32 %v356, %v371
  %v375 = vmul.f32 %v361, %v371
  %v376 = vmul.f32 %v364, %v371
  %v378 = vlaneseq
  %v379 = vshrl.u32 %v378, 7
  %v380 = vsub.s32 0, %v379
  %v381 = vrot.slane %v86, %v380
  %v383 = vadd.f32 %v373, %v381
  %v384 = vadd.f32 %v374, %v381
  %v385 = vadd.f32 %v375, %v381
  %v386 = vadd.f32 %v376, %v381
  %v387 = vmax.f32 %v383, 0.0
  %v388 = vmax.f32 %v384, 0.0
  %v389 = vmax.f32 %v385, 0.0
  %v390 = vmax.f32 %v386, 0.0
  %v407 = vunpack.c.l.b16 %v123
  %v408 = vunpack.c.l.b16 %v124
  %v409 = vunpack.c.l.b16 %v125
  %v410 = vunpack.c.l.b16 %v126
  %v411 = vunpack.c.l.b16 %v127
  %v412 = vunpack.c.l.b16 %v128
  %v413 = vunpack.c.l.b16 %v129
  %v414 = vunpack.c.l.b16 %v130
  %v415 = vunpack.c.l.b16 %v131
  %v416 = vunpack.c.l.b16 %v132
  %v417 = vunpack.c.l.b16 %v133
  %v418 = vunpack.c.l.b16 %v134
  %v419 = vunpack.c.l.b16 %v135
  %v420 = vunpack.c.l.b16 %v136
  %v421 = vunpack.c.l.b16 %v137
  %v422 = vunpack.c.l.b16 %v138
  %v423 = vpack.c.b16 %v408, %v407
  %v424 = vpack.c.b16 %v410, %v409
  %v425 = vpack.c.b16 %v412, %v411
  %v426 = vpack.c.b16 %v414, %v413
  %v427 = vpack.c.b16 %v416, %v415
  %v428 = vpack.c.b16 %v418, %v417
  %v429 = vpack.c.b16 %v420, %v419
  %v430 = vpack.c.b16 %v422, %v421
  %439 = vmatprep.subr.bf16.mxu0 0
  %440 = vmatpush1.bf16.msra.mxu0 %v423
  %441 = vmatprep.subr.bf16.mxu0 0
  %442 = vmatpush1.bf16.msra.mxu0 %v424
  %443 = vmatprep.subr.bf16.mxu0 0
  %444 = vmatpush1.bf16.msra.mxu0 %v425
  %445 = vmatprep.subr.bf16.mxu0 0
  %446 = vmatpush1.bf16.msra.mxu0 %v426
  %447 = vmatprep.subr.bf16.mxu0 0
  %448 = vmatpush1.bf16.msra.mxu0 %v427
  %449 = vmatprep.subr.bf16.mxu0 0
  %450 = vmatpush1.bf16.msra.mxu0 %v428
  %451 = vmatprep.subr.bf16.mxu0 0
  %452 = vmatpush1.bf16.msra.mxu0 %v429
  %453 = vmatprep.subr.bf16.mxu0 0
  %454 = vmatpush1.bf16.msra.mxu0 %v430
  %455 = vmatprep.subr.bf16.mxu0 0
  %456 = vmatpush1.bf16.msra.mxu0 0
  %457 = vmatprep.subr.bf16.mxu0 0
  %458 = vmatpush1.bf16.msra.mxu0 0
  %459 = vmatprep.subr.bf16.mxu0 0
  %460 = vmatpush1.bf16.msra.mxu0 0
  %461 = vmatprep.subr.bf16.mxu0 0
  %462 = vmatpush1.bf16.msra.mxu0 0
  %463 = vmatprep.subr.bf16.mxu0 0
  %464 = vmatpush1.bf16.msra.mxu0 0
  %465 = vmatprep.subr.bf16.mxu0 0
  %466 = vmatpush1.bf16.msra.mxu0 0
  %467 = vmatprep.subr.bf16.mxu0 0
  %468 = vmatpush1.bf16.msra.mxu0 0
  %469 = vmatprep.subr.bf16.mxu0 0
  %470 = vmatpush1.bf16.msra.mxu0 0
  %471 = vmatprep.mubr.bf16.mxu0 0
  %472 = vmatmul.mubr.bf16.gmra.mrb[0].mxu0 %v198
  %v473 = vpop.f32.mrb[0].mxu0
  %v474 = vadd.f32 0.0, %v473
  %v475 = vpop.f32.mrb[0].mxu0
  %v476 = vpop.f32.mrb[0].mxu0
  %v477 = vadd.f32 0.0, %v476
  %v478 = vpop.f32.mrb[0].mxu0
  %479 = vmatprep.mubr.bf16.mxu0 0
  %480 = vmatmul.mubr.bf16.gmra.mrb[0].mxu0 %v199
  %v481 = vpop.f32.mrb[0].mxu0
  %v482 = vadd.f32 0.0, %v481
  %v483 = vpop.f32.mrb[0].mxu0
  %v484 = vpop.f32.mrb[0].mxu0
  %v485 = vadd.f32 0.0, %v484
  %v486 = vpop.f32.mrb[0].mxu0
  %487 = vdwg.mxu0
  %v488 = vadd.f32 %v387, %v474
  %v489 = vadd.f32 %v388, %v477
  %v490 = vadd.f32 %v389, %v482
  %v491 = vadd.f32 %v390, %v485
  %v493 = vlaneseq
  %v494 = vshrl.u32 %v493, 7
  %v495 = vsub.s32 0, %v494
  %v496 = vrot.slane %v139, %v495
  %v498 = vadd.f32 %v488, %v496
  %v499 = vadd.f32 %v489, %v496
  %v500 = vadd.f32 %v490, %v496
  %v501 = vadd.f32 %v491, %v496
  %v502 = vpack.c.bf16 %v499, %v498
  %v503 = vpack.c.bf16 %v501, %v500
  %v520 = vunpack.c.l.b16 %v87
  %v521 = vunpack.c.l.b16 %v88
  %v522 = vunpack.c.l.b16 %v89
  %v523 = vunpack.c.l.b16 %v90
  %v524 = vunpack.c.l.b16 %v91
  %v525 = vunpack.c.l.b16 %v92
  %v526 = vunpack.c.l.b16 %v93
  %v527 = vunpack.c.l.b16 %v94
  %v528 = vunpack.c.l.b16 %v95
  %v529 = vunpack.c.l.b16 %v96
  %v530 = vunpack.c.l.b16 %v97
  %v531 = vunpack.c.l.b16 %v98
  %v532 = vunpack.c.l.b16 %v99
  %v533 = vunpack.c.l.b16 %v100
  %v534 = vunpack.c.l.b16 %v101
  %v535 = vunpack.c.l.b16 %v102
  %v536 = vpack.c.b16 %v521, %v520
  %v537 = vpack.c.b16 %v523, %v522
  %v538 = vpack.c.b16 %v525, %v524
  %v539 = vpack.c.b16 %v527, %v526
  %v540 = vpack.c.b16 %v529, %v528
  %v541 = vpack.c.b16 %v531, %v530
  %v542 = vpack.c.b16 %v533, %v532
  %v543 = vpack.c.b16 %v535, %v534
  %552 = vmatprep.subr.bf16.mxu0 0
  %553 = vmatpush1.bf16.msra.mxu0 %v536
  %554 = vmatprep.subr.bf16.mxu0 0
  %555 = vmatpush1.bf16.msra.mxu0 %v537
  %556 = vmatprep.subr.bf16.mxu0 0
  %557 = vmatpush1.bf16.msra.mxu0 %v538
  %558 = vmatprep.subr.bf16.mxu0 0
  %559 = vmatpush1.bf16.msra.mxu0 %v539
  %560 = vmatprep.subr.bf16.mxu0 0
  %561 = vmatpush1.bf16.msra.mxu0 %v540
  %562 = vmatprep.subr.bf16.mxu0 0
  %563 = vmatpush1.bf16.msra.mxu0 %v541
  %564 = vmatprep.subr.bf16.mxu0 0
  %565 = vmatpush1.bf16.msra.mxu0 %v542
  %566 = vmatprep.subr.bf16.mxu0 0
  %567 = vmatpush1.bf16.msra.mxu0 %v543
  %568 = vmatprep.subr.bf16.mxu0 0
  %569 = vmatpush1.bf16.msra.mxu0 0
  %570 = vmatprep.subr.bf16.mxu0 0
  %571 = vmatpush1.bf16.msra.mxu0 0
  %572 = vmatprep.subr.bf16.mxu0 0
  %573 = vmatpush1.bf16.msra.mxu0 0
  %574 = vmatprep.subr.bf16.mxu0 0
  %575 = vmatpush1.bf16.msra.mxu0 0
  %576 = vmatprep.subr.bf16.mxu0 0
  %577 = vmatpush1.bf16.msra.mxu0 0
  %578 = vmatprep.subr.bf16.mxu0 0
  %579 = vmatpush1.bf16.msra.mxu0 0
  %580 = vmatprep.subr.bf16.mxu0 0
  %581 = vmatpush1.bf16.msra.mxu0 0
  %582 = vmatprep.subr.bf16.mxu0 0
  %583 = vmatpush1.bf16.msra.mxu0 0
  %584 = vmatprep.mubr.bf16.mxu0 0
  %585 = vmatmul.mubr.bf16.gmra.mrb[0].mxu0 %v502
  %v586 = vpop.f32.mrb[0].mxu0
  %v587 = vadd.f32 0.0, %v586
  %v588 = vpop.f32.mrb[0].mxu0
  %v589 = vpop.f32.mrb[0].mxu0
  %v590 = vadd.f32 0.0, %v589
  %v591 = vpop.f32.mrb[0].mxu0
  %592 = vmatprep.mubr.bf16.mxu0 0
  %593 = vmatmul.mubr.bf16.gmra.mrb[0].mxu0 %v503
  %v594 = vpop.f32.mrb[0].mxu0
  %v595 = vadd.f32 0.0, %v594
  %v596 = vpop.f32.mrb[0].mxu0
  %v597 = vpop.f32.mrb[0].mxu0
  %v598 = vadd.f32 0.0, %v597
  %v599 = vpop.f32.mrb[0].mxu0
  %600 = vdwg.mxu0
  %v601 = vpack.c.bf16 %v590, %v587
  %v602 = vpack.c.bf16 %v598, %v595
  %603 = vmatprep.subr.bf16.mxu0 0
  %604 = vmatpush1.bf16.msra.mxu0 %v601
  %605 = vmatprep.subr.bf16.mxu0 0
  %606 = vmatpush1.bf16.msra.mxu0 %v602
  %607 = vmatprep.subr.bf16.mxu0 0
  %608 = vmatpush1.bf16.msra.mxu0 0
  %609 = vmatprep.subr.bf16.mxu0 0
  %610 = vmatpush1.bf16.msra.mxu0 0
  %611 = vmatprep.subr.bf16.mxu0 0
  %612 = vmatpush1.bf16.msra.mxu0 0
  %613 = vmatprep.subr.bf16.mxu0 0
  %614 = vmatpush1.bf16.msra.mxu0 0
  %615 = vmatprep.subr.bf16.mxu0 0
  %616 = vmatpush1.bf16.msra.mxu0 0
  %617 = vmatprep.subr.bf16.mxu0 0
  %618 = vmatpush1.bf16.msra.mxu0 0
  %619 = vmatprep.subr.bf16.mxu0 0
  %620 = vmatpush1.bf16.msra.mxu0 0
  %621 = vmatprep.subr.bf16.mxu0 0
  %622 = vmatpush1.bf16.msra.mxu0 0
  %623 = vmatprep.subr.bf16.mxu0 0
  %624 = vmatpush1.bf16.msra.mxu0 0
  %625 = vmatprep.subr.bf16.mxu0 0
  %626 = vmatpush1.bf16.msra.mxu0 0
  %627 = vmatprep.subr.bf16.mxu0 0
  %628 = vmatpush1.bf16.msra.mxu0 0
  %629 = vmatprep.subr.bf16.mxu0 0
  %630 = vmatpush1.bf16.msra.mxu0 0
  %631 = vmatprep.subr.bf16.mxu0 0
  %632 = vmatpush1.bf16.msra.mxu0 0
  %633 = vmatprep.subr.bf16.mxu0 0
  %634 = vmatpush1.bf16.msra.mxu0 0
  %635 = vmatprep.mubr.bf16.mxu0 0
  %636 = vmatmul.mubr.bf16.gmra.mrb[0].mxu0 %v313
  %v637 = vpop.f32.mrb[0].mxu0
  %v638 = vadd.f32 0.0, %v637
  %v639 = vpop.f32.mrb[0].mxu0
  %v640 = vpop.f32.mrb[0].mxu0
  %v641 = vadd.f32 0.0, %v640
  %v642 = vpop.f32.mrb[0].mxu0
  %643 = vmatprep.mubr.bf16.mxu0 0
  %644 = vmatmul.mubr.bf16.gmra.mrb[0].mxu0 %v316
  %v645 = vpop.f32.mrb[0].mxu0
  %v646 = vadd.f32 0.0, %v645
  %v647 = vpop.f32.mrb[0].mxu0
  %v648 = vpop.f32.mrb[0].mxu0
  %v649 = vadd.f32 0.0, %v648
  %v650 = vpop.f32.mrb[0].mxu0
  %651 = vdwg.mxu0
  %v653 = vlaneseq
  %v654 = vshrl.u32 %v653, 7
  %v655 = vsub.s32 0, %v654
  %v656 = vrot.slane %v103, %v655
  %v658 = vmul.f32 %v638, %v656
  %v659 = vmul.f32 %v641, %v656
  %v660 = vmul.f32 %v646, %v656
  %v661 = vmul.f32 %v649, %v656
  %v663 = vlaneseq
  %v664 = vshrl.u32 %v663, 7
  %v665 = vsub.s32 0, %v664
  %v666 = vrot.slane %v104, %v665
  %v668 = vadd.f32 %v658, %v666
  %v669 = vadd.f32 %v659, %v666
  %v670 = vadd.f32 %v660, %v666
  %v671 = vadd.f32 %v661, %v666
  %v672 = vmax.f32 %v668, 0.0
  %v673 = vmax.f32 %v669, 0.0
  %v674 = vmax.f32 %v670, 0.0
  %v675 = vmax.f32 %v671, 0.0
  %v676 = vpack.c.bf16 %v673, %v672
  %v677 = vpack.c.bf16 %v675, %v674
  %v694 = vunpack.c.l.b16 %v105
  %v695 = vunpack.c.l.b16 %v106
  %v696 = vunpack.c.l.b16 %v107
  %v697 = vunpack.c.l.b16 %v108
  %v698 = vunpack.c.l.b16 %v109
  %v699 = vunpack.c.l.b16 %v110
  %v700 = vunpack.c.l.b16 %v111
  %v701 = vunpack.c.l.b16 %v112
  %v702 = vunpack.c.l.b16 %v113
  %v703 = vunpack.c.l.b16 %v114
  %v704 = vunpack.c.l.b16 %v115
  %v705 = vunpack.c.l.b16 %v116
  %v706 = vunpack.c.l.b16 %v117
  %v707 = vunpack.c.l.b16 %v118
  %v708 = vunpack.c.l.b16 %v119
  %v709 = vunpack.c.l.b16 %v120
  %v710 = vpack.c.b16 %v695, %v694
  %v711 = vpack.c.b16 %v697, %v696
  %v712 = vpack.c.b16 %v699, %v698
  %v713 = vpack.c.b16 %v701, %v700
  %v714 = vpack.c.b16 %v703, %v702
  %v715 = vpack.c.b16 %v705, %v704
  %v716 = vpack.c.b16 %v707, %v706
  %v717 = vpack.c.b16 %v709, %v708
  %726 = vmatprep.subr.bf16.mxu0 0
  %727 = vmatpush1.bf16.msra.mxu0 %v710
  %728 = vmatprep.subr.bf16.mxu0 0
  %729 = vmatpush1.bf16.msra.mxu0 %v711
  %730 = vmatprep.subr.bf16.mxu0 0
  %731 = vmatpush1.bf16.msra.mxu0 %v712
  %732 = vmatprep.subr.bf16.mxu0 0
  %733 = vmatpush1.bf16.msra.mxu0 %v713
  %734 = vmatprep.subr.bf16.mxu0 0
  %735 = vmatpush1.bf16.msra.mxu0 %v714
  %736 = vmatprep.subr.bf16.mxu0 0
  %737 = vmatpush1.bf16.msra.mxu0 %v715
  %738 = vmatprep.subr.bf16.mxu0 0
  %739 = vmatpush1.bf16.msra.mxu0 %v716
  %740 = vmatprep.subr.bf16.mxu0 0
  %741 = vmatpush1.bf16.msra.mxu0 %v717
  %742 = vmatprep.subr.bf16.mxu0 0
  %743 = vmatpush1.bf16.msra.mxu0 0
  %744 = vmatprep.subr.bf16.mxu0 0
  %745 = vmatpush1.bf16.msra.mxu0 0
  %746 = vmatprep.subr.bf16.mxu0 0
  %747 = vmatpush1.bf16.msra.mxu0 0
  %748 = vmatprep.subr.bf16.mxu0 0
  %749 = vmatpush1.bf16.msra.mxu0 0
  %750 = vmatprep.subr.bf16.mxu0 0
  %751 = vmatpush1.bf16.msra.mxu0 0
  %752 = vmatprep.subr.bf16.mxu0 0
  %753 = vmatpush1.bf16.msra.mxu0 0
  %754 = vmatprep.subr.bf16.mxu0 0
  %755 = vmatpush1.bf16.msra.mxu0 0
  %756 = vmatprep.subr.bf16.mxu0 0
  %757 = vmatpush1.bf16.msra.mxu0 0
  %758 = vmatprep.mubr.bf16.mxu0 0
  %759 = vmatmul.mubr.bf16.gmra.mrb[0].mxu0 %v676
  %v760 = vpop.f32.mrb[0].mxu0
  %v761 = vadd.f32 0.0, %v760
  %v762 = vpop.f32.mrb[0].mxu0
  %v763 = vpop.f32.mrb[0].mxu0
  %v764 = vadd.f32 0.0, %v763
  %v765 = vpop.f32.mrb[0].mxu0
  %766 = vmatprep.mubr.bf16.mxu0 0
  %767 = vmatmul.mubr.bf16.gmra.mrb[0].mxu0 %v677
  %v768 = vpop.f32.mrb[0].mxu0
  %v769 = vadd.f32 0.0, %v768
  %v770 = vpop.f32.mrb[0].mxu0
  %v771 = vpop.f32.mrb[0].mxu0
  %v772 = vadd.f32 0.0, %v771
  %v773 = vpop.f32.mrb[0].mxu0
  %774 = vdwg.mxu0
  %v775 = vpack.c.bf16 %v764, %v761
  %v776 = vpack.c.bf16 %v772, %v769
  %777 = vmatprep.subr.bf16.mxu0 0
  %778 = vmatpush1.bf16.msra.mxu0 %v775
  %779 = vmatprep.subr.bf16.mxu0 0
  %780 = vmatpush1.bf16.msra.mxu0 %v776
  %781 = vmatprep.subr.bf16.mxu0 0
  %782 = vmatpush1.bf16.msra.mxu0 0
  %783 = vmatprep.subr.bf16.mxu0 0
  %784 = vmatpush1.bf16.msra.mxu0 0
  %785 = vmatprep.subr.bf16.mxu0 0
  %786 = vmatpush1.bf16.msra.mxu0 0
  %787 = vmatprep.subr.bf16.mxu0 0
  %788 = vmatpush1.bf16.msra.mxu0 0
  %789 = vmatprep.subr.bf16.mxu0 0
  %790 = vmatpush1.bf16.msra.mxu0 0
  %791 = vmatprep.subr.bf16.mxu0 0
  %792 = vmatpush1.bf16.msra.mxu0 0
  %793 = vmatprep.subr.bf16.mxu0 0
  %794 = vmatpush1.bf16.msra.mxu0 0
  %795 = vmatprep.subr.bf16.mxu0 0
  %796 = vmatpush1.bf16.msra.mxu0 0
  %797 = vmatprep.subr.bf16.mxu0 0
  %798 = vmatpush1.bf16.msra.mxu0 0
  %799 = vmatprep.subr.bf16.mxu0 0
  %800 = vmatpush1.bf16.msra.mxu0 0
  %801 = vmatprep.subr.bf16.mxu0 0
  %802 = vmatpush1.bf16.msra.mxu0 0
  %803 = vmatprep.subr.bf16.mxu0 0
  %804 = vmatpush1.bf16.msra.mxu0 0
  %805 = vmatprep.subr.bf16.mxu0 0
  %806 = vmatpush1.bf16.msra.mxu0 0
  %807 = vmatprep.subr.bf16.mxu0 0
  %808 = vmatpush1.bf16.msra.mxu0 0
  %809 = vmatprep.mubr.bf16.mxu0 0
  %810 = vmatmul.mubr.bf16.gmra.mrb[0].mxu0 %v313
  %v811 = vpop.f32.mrb[0].mxu0
  %v812 = vadd.f32 0.0, %v811
  %v813 = vpop.f32.mrb[0].mxu0
  %v814 = vpop.f32.mrb[0].mxu0
  %v815 = vadd.f32 0.0, %v814
  %v816 = vpop.f32.mrb[0].mxu0
  %817 = vmatprep.mubr.bf16.mxu0 0
  %818 = vmatmul.mubr.bf16.gmra.mrb[0].mxu0 %v316
  %v819 = vpop.f32.mrb[0].mxu0
  %v820 = vadd.f32 0.0, %v819
  %v821 = vpop.f32.mrb[0].mxu0
  %v822 = vpop.f32.mrb[0].mxu0
  %v823 = vadd.f32 0.0, %v822
  %v824 = vpop.f32.mrb[0].mxu0
  %825 = vdwg.mxu0
  %v827 = vlaneseq
  %v828 = vshrl.u32 %v827, 7
  %v829 = vsub.s32 0, %v828
  %v830 = vrot.slane %v121, %v829
  %v832 = vmul.f32 %v812, %v830
  %v833 = vmul.f32 %v815, %v830
  %v834 = vmul.f32 %v820, %v830
  %v835 = vmul.f32 %v823, %v830
  %v837 = vlaneseq
  %v838 = vshrl.u32 %v837, 7
  %v839 = vsub.s32 0, %v838
  %v840 = vrot.slane %v122, %v839
  %v842 = vadd.f32 %v832, %v840
  %v843 = vadd.f32 %v833, %v840
  %v844 = vadd.f32 %v834, %v840
  %v845 = vadd.f32 %v835, %v840
  %v846 = vmax.f32 %v842, 0.0
  %v847 = vmax.f32 %v843, 0.0
  %v848 = vmax.f32 %v844, 0.0
  %v849 = vmax.f32 %v845, 0.0
  %v850 = vpack.c.bf16 %v847, %v846
  %v851 = vpack.c.bf16 %v849, %v848
  %v853 = vlaneseq
  %v854 = vshrl.u32 %v853, 7
  %v855 = vsub.s32 0, %v854
  %v856 = vrot.slane %v156, %v855
  %v874 = vunpack.c.l.b16 %v140
  %v875 = vunpack.c.l.b16 %v141
  %v876 = vunpack.c.l.b16 %v142
  %v877 = vunpack.c.l.b16 %v143
  %v878 = vunpack.c.l.b16 %v144
  %v879 = vunpack.c.l.b16 %v145
  %v880 = vunpack.c.l.b16 %v146
  %v881 = vunpack.c.l.b16 %v147
  %v882 = vunpack.c.l.b16 %v148
  %v883 = vunpack.c.l.b16 %v149
  %v884 = vunpack.c.l.b16 %v150
  %v885 = vunpack.c.l.b16 %v151
  %v886 = vunpack.c.l.b16 %v152
  %v887 = vunpack.c.l.b16 %v153
  %v888 = vunpack.c.l.b16 %v154
  %v889 = vunpack.c.l.b16 %v155
  %v890 = vpack.c.b16 %v875, %v874
  %v891 = vpack.c.b16 %v877, %v876
  %v892 = vpack.c.b16 %v879, %v878
  %v893 = vpack.c.b16 %v881, %v880
  %v894 = vpack.c.b16 %v883, %v882
  %v895 = vpack.c.b16 %v885, %v884
  %v896 = vpack.c.b16 %v887, %v886
  %v897 = vpack.c.b16 %v889, %v888
  %906 = vmatprep.subr.bf16.mxu0 0
  %907 = vmatpush1.bf16.msra.mxu0 %v890
  %908 = vmatprep.subr.bf16.mxu0 0
  %909 = vmatpush1.bf16.msra.mxu0 %v891
  %910 = vmatprep.subr.bf16.mxu0 0
  %911 = vmatpush1.bf16.msra.mxu0 %v892
  %912 = vmatprep.subr.bf16.mxu0 0
  %913 = vmatpush1.bf16.msra.mxu0 %v893
  %914 = vmatprep.subr.bf16.mxu0 0
  %915 = vmatpush1.bf16.msra.mxu0 %v894
  %916 = vmatprep.subr.bf16.mxu0 0
  %917 = vmatpush1.bf16.msra.mxu0 %v895
  %918 = vmatprep.subr.bf16.mxu0 0
  %919 = vmatpush1.bf16.msra.mxu0 %v896
  %920 = vmatprep.subr.bf16.mxu0 0
  %921 = vmatpush1.bf16.msra.mxu0 %v897
  %922 = vmatprep.subr.bf16.mxu0 0
  %923 = vmatpush1.bf16.msra.mxu0 0
  %924 = vmatprep.subr.bf16.mxu0 0
  %925 = vmatpush1.bf16.msra.mxu0 0
  %926 = vmatprep.subr.bf16.mxu0 0
  %927 = vmatpush1.bf16.msra.mxu0 0
  %928 = vmatprep.subr.bf16.mxu0 0
  %929 = vmatpush1.bf16.msra.mxu0 0
  %930 = vmatprep.subr.bf16.mxu0 0
  %931 = vmatpush1.bf16.msra.mxu0 0
  %932 = vmatprep.subr.bf16.mxu0 0
  %933 = vmatpush1.bf16.msra.mxu0 0
  %934 = vmatprep.subr.bf16.mxu0 0
  %935 = vmatpush1.bf16.msra.mxu0 0
  %936 = vmatprep.subr.bf16.mxu0 0
  %937 = vmatpush1.bf16.msra.mxu0 0
  %938 = vmatprep.mubr.bf16.mxu0 0
  %939 = vmatmul.mubr.bf16.gmra.mrb[0].mxu0 %v850
  %v940 = vpop.f32.mrb[0].mxu0
  %v941 = vadd.f32 %v856, %v940
  %v942 = vpop.f32.mrb[0].mxu0
  %v943 = vpop.f32.mrb[0].mxu0
  %v944 = vadd.f32 %v856, %v943
  %v945 = vpop.f32.mrb[0].mxu0
  %946 = vmatprep.mubr.bf16.mxu0 0
  %947 = vmatmul.mubr.bf16.gmra.mrb[0].mxu0 %v851
  %v948 = vpop.f32.mrb[0].mxu0
  %v949 = vadd.f32 %v856, %v948
  %v950 = vpop.f32.mrb[0].mxu0
  %v951 = vpop.f32.mrb[0].mxu0
  %v952 = vadd.f32 %v856, %v951
  %v953 = vpop.f32.mrb[0].mxu0
  %954 = vdwg.mxu0
  %v955 = vmax.f32 %v941, 0.0
  %v956 = vmax.f32 %v944, 0.0
  %v957 = vmax.f32 %v949, 0.0
  %v958 = vmax.f32 %v952, 0.0
  %v959 = vpack.c.bf16 %v956, %v955
  %v960 = vpack.c.bf16 %v958, %v957
  %v962 = vlaneseq
  %v963 = vshrl.u32 %v962, 7
  %v964 = vsub.s32 0, %v963
  %v965 = vrot.slane %v173, %v964
  %v983 = vunpack.c.l.b16 %v157
  %v984 = vunpack.c.l.b16 %v158
  %v985 = vunpack.c.l.b16 %v159
  %v986 = vunpack.c.l.b16 %v160
  %v987 = vunpack.c.l.b16 %v161
  %v988 = vunpack.c.l.b16 %v162
  %v989 = vunpack.c.l.b16 %v163
  %v990 = vunpack.c.l.b16 %v164
  %v991 = vunpack.c.l.b16 %v165
  %v992 = vunpack.c.l.b16 %v166
  %v993 = vunpack.c.l.b16 %v167
  %v994 = vunpack.c.l.b16 %v168
  %v995 = vunpack.c.l.b16 %v169
  %v996 = vunpack.c.l.b16 %v170
  %v997 = vunpack.c.l.b16 %v171
  %v998 = vunpack.c.l.b16 %v172
  %v999 = vpack.c.b16 %v984, %v983
  %v1000 = vpack.c.b16 %v986, %v985
  %v1001 = vpack.c.b16 %v988, %v987
  %v1002 = vpack.c.b16 %v990, %v989
  %v1003 = vpack.c.b16 %v992, %v991
  %v1004 = vpack.c.b16 %v994, %v993
  %v1005 = vpack.c.b16 %v996, %v995
  %v1006 = vpack.c.b16 %v998, %v997
  %1015 = vmatprep.subr.bf16.mxu0 0
  %1016 = vmatpush1.bf16.msra.mxu0 %v999
  %1017 = vmatprep.subr.bf16.mxu0 0
  %1018 = vmatpush1.bf16.msra.mxu0 %v1000
  %1019 = vmatprep.subr.bf16.mxu0 0
  %1020 = vmatpush1.bf16.msra.mxu0 %v1001
  %1021 = vmatprep.subr.bf16.mxu0 0
  %1022 = vmatpush1.bf16.msra.mxu0 %v1002
  %1023 = vmatprep.subr.bf16.mxu0 0
  %1024 = vmatpush1.bf16.msra.mxu0 %v1003
  %1025 = vmatprep.subr.bf16.mxu0 0
  %1026 = vmatpush1.bf16.msra.mxu0 %v1004
  %1027 = vmatprep.subr.bf16.mxu0 0
  %1028 = vmatpush1.bf16.msra.mxu0 %v1005
  %1029 = vmatprep.subr.bf16.mxu0 0
  %1030 = vmatpush1.bf16.msra.mxu0 %v1006
  %1031 = vmatprep.subr.bf16.mxu0 0
  %1032 = vmatpush1.bf16.msra.mxu0 0
  %1033 = vmatprep.subr.bf16.mxu0 0
  %1034 = vmatpush1.bf16.msra.mxu0 0
  %1035 = vmatprep.subr.bf16.mxu0 0
  %1036 = vmatpush1.bf16.msra.mxu0 0
  %1037 = vmatprep.subr.bf16.mxu0 0
  %1038 = vmatpush1.bf16.msra.mxu0 0
  %1039 = vmatprep.subr.bf16.mxu0 0
  %1040 = vmatpush1.bf16.msra.mxu0 0
  %1041 = vmatprep.subr.bf16.mxu0 0
  %1042 = vmatpush1.bf16.msra.mxu0 0
  %1043 = vmatprep.subr.bf16.mxu0 0
  %1044 = vmatpush1.bf16.msra.mxu0 0
  %1045 = vmatprep.subr.bf16.mxu0 0
  %1046 = vmatpush1.bf16.msra.mxu0 0
  %1047 = vmatprep.mubr.bf16.mxu0 0
  %1048 = vmatmul.mubr.bf16.gmra.mrb[0].mxu0 %v959
  %v1049 = vpop.f32.mrb[0].mxu0
  %v1050 = vadd.f32 %v965, %v1049
  %v1051 = vpop.f32.mrb[0].mxu0
  %v1052 = vpop.f32.mrb[0].mxu0
  %v1053 = vadd.f32 %v965, %v1052
  %v1054 = vpop.f32.mrb[0].mxu0
  %1055 = vmatprep.mubr.bf16.mxu0 0
  %1056 = vmatmul.mubr.bf16.gmra.mrb[0].mxu0 %v960
  %v1057 = vpop.f32.mrb[0].mxu0
  %v1058 = vadd.f32 %v965, %v1057
  %v1059 = vpop.f32.mrb[0].mxu0
  %v1060 = vpop.f32.mrb[0].mxu0
  %v1061 = vadd.f32 %v965, %v1060
  %v1062 = vpop.f32.mrb[0].mxu0
  %1063 = vdwg.mxu0
  %v1064 = vpack.c.bf16 %v1053, %v1050
  %v1065 = vpack.c.bf16 %v1061, %v1058
  %v1082 = vunpack.c.l.b16 %v174
  %v1083 = vunpack.c.l.b16 %v175
  %v1084 = vunpack.c.l.b16 %v176
  %v1085 = vunpack.c.l.b16 %v177
  %v1086 = vunpack.c.l.b16 %v178
  %v1087 = vunpack.c.l.b16 %v179
  %v1088 = vunpack.c.l.b16 %v180
  %v1089 = vunpack.c.l.b16 %v181
  %v1090 = vunpack.c.l.b16 %v182
  %v1091 = vunpack.c.l.b16 %v183
  %v1092 = vunpack.c.l.b16 %v184
  %v1093 = vunpack.c.l.b16 %v185
  %v1094 = vunpack.c.l.b16 %v186
  %v1095 = vunpack.c.l.b16 %v187
  %v1096 = vunpack.c.l.b16 %v188
  %v1097 = vunpack.c.l.b16 %v189
  %v1098 = vpack.c.b16 %v1083, %v1082
  %v1099 = vpack.c.b16 %v1085, %v1084
  %v1100 = vpack.c.b16 %v1087, %v1086
  %v1101 = vpack.c.b16 %v1089, %v1088
  %v1102 = vpack.c.b16 %v1091, %v1090
  %v1103 = vpack.c.b16 %v1093, %v1092
  %v1104 = vpack.c.b16 %v1095, %v1094
  %v1105 = vpack.c.b16 %v1097, %v1096
  %v1107 = vsel %vm311, %v1098, 0
  %v1110 = vsel %vm311, %v1099, 0
  %v1113 = vsel %vm311, %v1100, 0
  %v1116 = vsel %vm311, %v1101, 0
  %v1119 = vsel %vm311, %v1102, 0
  %v1122 = vsel %vm311, %v1103, 0
  %v1125 = vsel %vm311, %v1104, 0
  %v1128 = vsel %vm311, %v1105, 0
  %1130 = vmatprep.subr.bf16.mxu0 0
  %1131 = vmatpush1.bf16.msra.mxu0 %v1064
  %1132 = vmatprep.subr.bf16.mxu0 0
  %1133 = vmatpush1.bf16.msra.mxu0 %v1065
  %1134 = vmatprep.subr.bf16.mxu0 0
  %1135 = vmatpush1.bf16.msra.mxu0 0
  %1136 = vmatprep.subr.bf16.mxu0 0
  %1137 = vmatpush1.bf16.msra.mxu0 0
  %1138 = vmatprep.subr.bf16.mxu0 0
  %1139 = vmatpush1.bf16.msra.mxu0 0
  %1140 = vmatprep.subr.bf16.mxu0 0
  %1141 = vmatpush1.bf16.msra.mxu0 0
  %1142 = vmatprep.subr.bf16.mxu0 0
  %1143 = vmatpush1.bf16.msra.mxu0 0
  %1144 = vmatprep.subr.bf16.mxu0 0
  %1145 = vmatpush1.bf16.msra.mxu0 0
  %1146 = vmatprep.subr.bf16.mxu0 0
  %1147 = vmatpush1.bf16.msra.mxu0 0
  %1148 = vmatprep.subr.bf16.mxu0 0
  %1149 = vmatpush1.bf16.msra.mxu0 0
  %1150 = vmatprep.subr.bf16.mxu0 0
  %1151 = vmatpush1.bf16.msra.mxu0 0
  %1152 = vmatprep.subr.bf16.mxu0 0
  %1153 = vmatpush1.bf16.msra.mxu0 0
  %1154 = vmatprep.subr.bf16.mxu0 0
  %1155 = vmatpush1.bf16.msra.mxu0 0
  %1156 = vmatprep.subr.bf16.mxu0 0
  %1157 = vmatpush1.bf16.msra.mxu0 0
  %1158 = vmatprep.subr.bf16.mxu0 0
  %1159 = vmatpush1.bf16.msra.mxu0 0
  %1160 = vmatprep.subr.bf16.mxu0 0
  %1161 = vmatpush1.bf16.msra.mxu0 0
  %1162 = vmatprep.mubr.bf16.mxu0 0
  %1163 = vmatmul.mubr.bf16.gmra.mrb[0].mxu0 %v1107
  %v1164 = vpop.f32.mrb[0].mxu0
  %v1165 = vadd.f32 0.0, %v1164
  %v1166 = vpop.f32.mrb[0].mxu0
  %v1167 = vpop.f32.mrb[0].mxu0
  %v1168 = vadd.f32 0.0, %v1167
  %v1169 = vpop.f32.mrb[0].mxu0
  %1170 = vmatprep.mubr.bf16.mxu0 0
  %1171 = vmatmul.mubr.bf16.gmra.mrb[0].mxu0 %v1110
  %v1172 = vpop.f32.mrb[0].mxu0
  %v1173 = vadd.f32 0.0, %v1172
  %v1174 = vpop.f32.mrb[0].mxu0
  %v1175 = vpop.f32.mrb[0].mxu0
  %v1176 = vadd.f32 0.0, %v1175
  %v1177 = vpop.f32.mrb[0].mxu0
  %1178 = vmatprep.mubr.bf16.mxu0 0
  %1179 = vmatmul.mubr.bf16.gmra.mrb[0].mxu0 %v1113
  %v1180 = vpop.f32.mrb[0].mxu0
  %v1181 = vadd.f32 0.0, %v1180
  %v1182 = vpop.f32.mrb[0].mxu0
  %v1183 = vpop.f32.mrb[0].mxu0
  %v1184 = vadd.f32 0.0, %v1183
  %v1185 = vpop.f32.mrb[0].mxu0
  %1186 = vmatprep.mubr.bf16.mxu0 0
  %1187 = vmatmul.mubr.bf16.gmra.mrb[0].mxu0 %v1116
  %v1188 = vpop.f32.mrb[0].mxu0
  %v1189 = vadd.f32 0.0, %v1188
  %v1190 = vpop.f32.mrb[0].mxu0
  %v1191 = vpop.f32.mrb[0].mxu0
  %v1192 = vadd.f32 0.0, %v1191
  %v1193 = vpop.f32.mrb[0].mxu0
  %1194 = vmatprep.mubr.bf16.mxu0 0
  %1195 = vmatmul.mubr.bf16.gmra.mrb[0].mxu0 %v1119
  %v1196 = vpop.f32.mrb[0].mxu0
  %v1197 = vadd.f32 0.0, %v1196
  %v1198 = vpop.f32.mrb[0].mxu0
  %v1199 = vpop.f32.mrb[0].mxu0
  %v1200 = vadd.f32 0.0, %v1199
  %v1201 = vpop.f32.mrb[0].mxu0
  %1202 = vmatprep.mubr.bf16.mxu0 0
  %1203 = vmatmul.mubr.bf16.gmra.mrb[0].mxu0 %v1122
  %v1204 = vpop.f32.mrb[0].mxu0
  %v1205 = vadd.f32 0.0, %v1204
  %v1206 = vpop.f32.mrb[0].mxu0
  %v1207 = vpop.f32.mrb[0].mxu0
  %v1208 = vadd.f32 0.0, %v1207
  %v1209 = vpop.f32.mrb[0].mxu0
  %1210 = vmatprep.mubr.bf16.mxu0 0
  %1211 = vmatmul.mubr.bf16.gmra.mrb[0].mxu0 %v1125
  %v1212 = vpop.f32.mrb[0].mxu0
  %v1213 = vadd.f32 0.0, %v1212
  %v1214 = vpop.f32.mrb[0].mxu0
  %v1215 = vpop.f32.mrb[0].mxu0
  %v1216 = vadd.f32 0.0, %v1215
  %v1217 = vpop.f32.mrb[0].mxu0
  %1218 = vmatprep.mubr.bf16.mxu0 0
  %1219 = vmatmul.mubr.bf16.gmra.mrb[0].mxu0 %v1128
  %v1220 = vpop.f32.mrb[0].mxu0
  %v1221 = vadd.f32 0.0, %v1220
  %v1222 = vpop.f32.mrb[0].mxu0
  %v1223 = vpop.f32.mrb[0].mxu0
  %v1224 = vadd.f32 0.0, %v1223
  %v1225 = vpop.f32.mrb[0].mxu0
  %1226 = vdwg.mxu0
  %v1227 = vpack.c.bf16 %v1168, %v1165
  %v1228 = vpack.c.bf16 %v1176, %v1173
  %v1229 = vpack.c.bf16 %v1184, %v1181
  %v1230 = vpack.c.bf16 %v1192, %v1189
  %v1231 = vpack.c.bf16 %v1200, %v1197
  %v1232 = vpack.c.bf16 %v1208, %v1205
  %v1233 = vpack.c.bf16 %v1216, %v1213
  %v1234 = vpack.c.bf16 %v1224, %v1221
  %1235 = vmatprep.subr.bf16.mxu0 0
  %1236 = vmatpush1.bf16.xpose.msra.mxu0 %v1227
  %1237 = vmatprep.subr.bf16.mxu0 0
  %1238 = vmatpush1.bf16.xpose.msra.mxu0 %v1228
  %1239 = vmatprep.subr.bf16.mxu0 0
  %1240 = vmatpush1.bf16.xpose.msra.mxu0 %v1229
  %1241 = vmatprep.subr.bf16.mxu0 0
  %1242 = vmatpush1.bf16.xpose.msra.mxu0 %v1230
  %1243 = vmatprep.subr.bf16.mxu0 0
  %1244 = vmatpush1.bf16.xpose.msra.mxu0 %v1231
  %1245 = vmatprep.subr.bf16.mxu0 0
  %1246 = vmatpush1.bf16.xpose.msra.mxu0 %v1232
  %1247 = vmatprep.subr.bf16.mxu0 0
  %1248 = vmatpush1.bf16.xpose.msra.mxu0 %v1233
  %1249 = vmatprep.subr.bf16.mxu0 0
  %1250 = vmatpush1.bf16.xpose.msra.mxu0 %v1234
  %1251 = vmatprep.subr.bf16.mxu0 0
  %1252 = vmatpush1.bf16.xpose.msra.mxu0 0
  %1253 = vmatprep.subr.bf16.mxu0 0
  %1254 = vmatpush1.bf16.xpose.msra.mxu0 0
  %1255 = vmatprep.subr.bf16.mxu0 0
  %1256 = vmatpush1.bf16.xpose.msra.mxu0 0
  %1257 = vmatprep.subr.bf16.mxu0 0
  %1258 = vmatpush1.bf16.xpose.msra.mxu0 0
  %1259 = vmatprep.subr.bf16.mxu0 0
  %1260 = vmatpush1.bf16.xpose.msra.mxu0 0
  %1261 = vmatprep.subr.bf16.mxu0 0
  %1262 = vmatpush1.bf16.xpose.msra.mxu0 0
  %1263 = vmatprep.subr.bf16.mxu0 0
  %1264 = vmatpush1.bf16.xpose.msra.mxu0 0
  %1265 = vmatprep.subr.bf16.mxu0 0
  %1266 = vmatpush1.bf16.xpose.msra.mxu0 0
  %1267 = vmatprep.mubr.bf16.mxu0 0
  %1268 = vmatmul.mubr.bf16.gmra.mrb[0].mxu0 %v1065
  %v1269 = vpop.f32.mrb[0].mxu0
  %v1270 = vadd.f32 0.0, %v1269
  %v1271 = vpop.f32.mrb[0].mxu0
  %v1272 = vpop.f32.mrb[0].mxu0
  %v1273 = vadd.f32 0.0, %v1272
  %v1274 = vpop.f32.mrb[0].mxu0
  %1275 = vdwg.mxu0
  %v1276 = vmul.f32 %v1058, %v1058
  %v1277 = vmul.f32 %v1061, %v1061
  %1278 = vadd.xlane.f32.xlu0 %v1276
  %v1279 = vpop.xlane.xlu0 %1278
  %1280 = vadd.xlane.f32.xlu0 %v1277
  %v1281 = vpop.xlane.xlu0 %1280
  %v1282 = vmul.f32 %v1165, %v1165
  %v1283 = vmul.f32 %v1168, %v1168
  %v1284 = vmul.f32 %v1173, %v1173
  %v1285 = vmul.f32 %v1176, %v1176
  %v1286 = vmul.f32 %v1181, %v1181
  %v1287 = vmul.f32 %v1184, %v1184
  %v1288 = vmul.f32 %v1189, %v1189
  %v1289 = vmul.f32 %v1192, %v1192
  %v1290 = vmul.f32 %v1197, %v1197
  %v1291 = vmul.f32 %v1200, %v1200
  %v1292 = vmul.f32 %v1205, %v1205
  %v1293 = vmul.f32 %v1208, %v1208
  %v1294 = vmul.f32 %v1213, %v1213
  %v1295 = vmul.f32 %v1216, %v1216
  %v1296 = vmul.f32 %v1221, %v1221
  %v1297 = vmul.f32 %v1224, %v1224
  %v1298 = vpack.c.bf16 %v1283, %v1282
  %v1299 = vpack.c.bf16 %v1285, %v1284
  %v1300 = vpack.c.bf16 %v1287, %v1286
  %v1301 = vpack.c.bf16 %v1289, %v1288
  %v1302 = vpack.c.bf16 %v1291, %v1290
  %v1303 = vpack.c.bf16 %v1293, %v1292
  %v1304 = vpack.c.bf16 %v1295, %v1294
  %v1305 = vpack.c.bf16 %v1297, %v1296
  %1306 = vmatprep.subr.bf16.mxu0 0
  %1307 = vmatpush1.bf16.xpose.msra.mxu0 %v1298
  %1308 = vmatprep.subr.bf16.mxu0 0
  %1309 = vmatpush1.bf16.xpose.msra.mxu0 %v1299
  %1310 = vmatprep.subr.bf16.mxu0 0
  %1311 = vmatpush1.bf16.xpose.msra.mxu0 %v1300
  %1312 = vmatprep.subr.bf16.mxu0 0
  %1313 = vmatpush1.bf16.xpose.msra.mxu0 %v1301
  %1314 = vmatprep.subr.bf16.mxu0 0
  %1315 = vmatpush1.bf16.xpose.msra.mxu0 %v1302
  %1316 = vmatprep.subr.bf16.mxu0 0
  %1317 = vmatpush1.bf16.xpose.msra.mxu0 %v1303
  %1318 = vmatprep.subr.bf16.mxu0 0
  %1319 = vmatpush1.bf16.xpose.msra.mxu0 %v1304
  %1320 = vmatprep.subr.bf16.mxu0 0
  %1321 = vmatpush1.bf16.xpose.msra.mxu0 %v1305
  %1322 = vmatprep.subr.bf16.mxu0 0
  %1323 = vmatpush1.bf16.xpose.msra.mxu0 0
  %1324 = vmatprep.subr.bf16.mxu0 0
  %1325 = vmatpush1.bf16.xpose.msra.mxu0 0
  %1326 = vmatprep.subr.bf16.mxu0 0
  %1327 = vmatpush1.bf16.xpose.msra.mxu0 0
  %1328 = vmatprep.subr.bf16.mxu0 0
  %1329 = vmatpush1.bf16.xpose.msra.mxu0 0
  %1330 = vmatprep.subr.bf16.mxu0 0
  %1331 = vmatpush1.bf16.xpose.msra.mxu0 0
  %1332 = vmatprep.subr.bf16.mxu0 0
  %1333 = vmatpush1.bf16.xpose.msra.mxu0 0
  %1334 = vmatprep.subr.bf16.mxu0 0
  %1335 = vmatpush1.bf16.xpose.msra.mxu0 0
  %1336 = vmatprep.subr.bf16.mxu0 0
  %1337 = vmatpush1.bf16.xpose.msra.mxu0 0
  %1338 = vmatprep.mubr.bf16.mxu0 0
  %1339 = vmatmul.mubr.bf16.gmra.mrb[0].mxu0 1065369472
  %v1340 = vpop.f32.mrb[0].mxu0
  %v1341 = vadd.f32 0.0, %v1340
  %v1342 = vpop.f32.mrb[0].mxu0
  %v1343 = vpop.f32.mrb[0].mxu0
  %v1344 = vpop.f32.mrb[0].mxu0
  %1345 = vdwg.mxu0
  %v1346 = vlaneseq
  %v1347 = vshrl.u32 %v1346, 7
  %v1348 = vsub.s32 0, %v1347
  %v1349 = vrot.slane %v1341, %v1348
  %v1350 = vadd.f32 %v1279, %v1349
  %v1351 = vadd.f32 %v1281, %v1349
  %v1352 = vmul.f32 %v1270, 2.0
  %v1353 = vmul.f32 %v1273, 2.0
  %v1354 = vsub.f32 %v1350, %v1352
  %v1355 = vsub.f32 %v1351, %v1353
  %v1356 = vmax.f32 %v1354, 0.0
  %v1357 = vmax.f32 %v1355, 0.0
  %v1358 = vrsqrt.pop %v1356
  %v1359 = vmul.f32 %v1356, %v1358
  %vm1360 = vcmp.eq.f32.partialorder %v1356, inf
  %v1361 = vsel %vm1360, %v1356, %v1359
  %vm1362 = vcmp.eq.f32.partialorder %v1356, 0.0
  %v1363 = vand.u32 %v1356, 2147483648
  %v1364 = vsel %vm1362, %v1363, %v1361
  %v1365 = vrsqrt.pop %v1357
  %v1366 = vmul.f32 %v1357, %v1365
  %vm1367 = vcmp.eq.f32.partialorder %v1357, inf
  %v1368 = vsel %vm1367, %v1357, %v1366
  %vm1369 = vcmp.eq.f32.partialorder %v1357, 0.0
  %v1370 = vand.u32 %v1357, 2147483648
  %v1371 = vsel %vm1369, %v1370, %v1368
  %v1372 = vsub.f32 0.0, %v1364
  %v1373 = vsub.f32 0.0, %v1371
  %1374 = vst [vmem:[%s18] sm:$0xff] %v1372
  %1375 = vst [vmem:[%s18 + $0x8] sm:$0xff] %v1373
  // Predicated region
  $region74: #{protonet_forward.1} parent=0 // pred_check
    _
  $region75: #{protonet_forward.1} parent=0 // pred_check_branch
    %1377 = sbr.rel (0) target = $region77
  $region76: #{protonet_forward.1} parent=0 // pred_region
    _
  $region77: #{protonet_forward.1} parent=0 // pred_fallthru
    _
  // Predicated region
  $region78: #{protonet_forward.1} parent=0 // pred_check
    _
  $region79: #{protonet_forward.1} parent=0 // pred_check_branch
    %1379 = sbr.rel (0) target = $region81
  $region80: #{protonet_forward.1} parent=0 // pred_region
    _
  $region81: #{protonet_forward.1} parent=0 // pred_fallthru
    _

</llo_original>
